<compile_context>
chip_gen: v5e
topology: v5e:2x2
jax: 0.10.0
libtpu: 0.0.40
codegen_flags: <defaults>
</compile_context>

<pallas_src>
import jax
import jax.numpy as jnp
from jax import lax
from jax.experimental import pallas as pl
from jax.experimental.pallas import tpu as pltpu

# ----------------------------- configuration -------------------------------
B = 2                      # batch
WINDOW = 8                 # transformer window (T)
D_FEATS = 6 + 3 + 6 + 3    # = 18 decoder input features
D_MODEL = 32
N_HEAD = 2
D_K = 16
D_V = 16
D_INNER = 64
N_LAYERS = 2
MLP_H = (512, 256)         # self.mlp_hsize
OUT_PAD = 128              # lane-dense padded fc output width (real output = 3)
SEL_ROWS = 8               # sublane-padded row count for the head MLP
EPS = 1e-5                 # PyTorch nn.LayerNorm default
BT = B * WINDOW
QKV_W = N_HEAD * (2 * D_K + D_V)   # fused q|k|v projection width = 96
VEC_ROWS = 8               # packed f32 param rows per layer


# ------------------------------ Pallas kernel -------------------------------
def _layer_norm(x, g, b):
    # var = E[x^2] - mean^2: two independent cross-lane reductions (overlap on XLU)
    mu = jnp.mean(x, axis=-1, keepdims=True)
    ms = jnp.mean(x * x, axis=-1, keepdims=True)
    var = ms - mu * mu
    return (x - mu) * lax.rsqrt(var + EPS) * g + b


def _mm_bf16(x_bf16, w_bf16):
    # bf16 MXU matmul with f32 accumulation
    return jnp.dot(x_bf16, w_bf16, preferred_element_type=jnp.float32)


def fused_forward_kernel(dec_ref, pos_ref, mask_ref, emb_w_ref,
                         qkv_w_ref, wo_w_ref, ffn1_w_ref, ffn2_w_ref,
                         vec_ref, head_b_ref,
                         mlp_w1_hbm, mlp_w2_hbm, fc_w_hbm,
                         out_ref,
                         mlp_w1_v, mlp_w2_v, fc_w_v, dma_sem):
    # ---- kick off DMAs of the large head weights (overlap with the layers) ---
    cp_w1 = pltpu.make_async_copy(mlp_w1_hbm, mlp_w1_v, dma_sem.at[0])
    cp_w2 = pltpu.make_async_copy(mlp_w2_hbm, mlp_w2_v, dma_sem.at[1])
    cp_fc = pltpu.make_async_copy(fc_w_hbm, fc_w_v, dma_sem.at[2])
    cp_w1.start()
    cp_w2.start()
    cp_fc.start()

    scale = 1.0 / (D_K ** 0.5)
    mask_add = mask_ref[...]                                       # (BT, BT) f32

    # ---- embed + positional encoding (emb bias pre-folded into pos) ---------
    x = _mm_bf16(dec_ref[...].astype(jnp.bfloat16), emb_w_ref[...]) + pos_ref[...]

    # ---- post-LN transformer decoder layers ---------------------------------
    for l in range(N_LAYERS):
        qkv_w = qkv_w_ref[l * D_MODEL:(l + 1) * D_MODEL, :]        # (32, 96)  bf16
        wo_w = wo_w_ref[l * D_MODEL:(l + 1) * D_MODEL, :]          # (32, 32)  bf16
        w1 = ffn1_w_ref[l * D_MODEL:(l + 1) * D_MODEL, :]          # (32, 64)  bf16
        w2 = ffn2_w_ref[l * D_INNER:(l + 1) * D_INNER, :]          # (64, 32)  bf16

        base = l * VEC_ROWS

        def prow(r, width):                                        # (1, width) f32
            return vec_ref[base + r: base + r + 1, :][:, :width]

        b_qkv = prow(0, QKV_W)
        bo = prow(1, D_MODEL)
        g1 = prow(2, D_MODEL)
        be1 = prow(3, D_MODEL)
        b1 = prow(4, D_INNER)
        b2 = prow(5, D_MODEL)
        g2 = prow(6, D_MODEL)
        be2 = prow(7, D_MODEL)

        # fused Q|K|V projection: one push, one bias add
        x_bf = x.astype(jnp.bfloat16)
        qkv = _mm_bf16(x_bf, qkv_w) + b_qkv                        # (BT, 96) f32

        ctxs = []
        for h in range(N_HEAD):                                    # static, tiny
            qh = qkv[:, h * D_K:(h + 1) * D_K]
            kh = qkv[:, N_HEAD * D_K + h * D_K: N_HEAD * D_K + (h + 1) * D_K]
            vh = qkv[:, 2 * N_HEAD * D_K + h * D_V: 2 * N_HEAD * D_K + (h + 1) * D_V]
            # scores = qh @ kh^T (contraction on last dims, f32)
            s = lax.dot_general(qh, kh, (((1,), (1,)), ((), ())),
                                preferred_element_type=jnp.float32)
            s = s * scale + mask_add
            s = s - jnp.max(s, axis=-1, keepdims=True)
            e = jnp.exp(s)
            p = e * pl.reciprocal(jnp.sum(e, axis=-1, keepdims=True), approx=True)
            ctxs.append(jnp.dot(p, vh, preferred_element_type=jnp.float32))
        ctx = jnp.concatenate(ctxs, axis=-1)                       # (BT, 32) f32

        # single merged output projection over both heads
        attn_out = _mm_bf16(ctx.astype(jnp.bfloat16), wo_w) + bo
        y = _layer_norm(attn_out + x, g1, be1)

        y_bf = y.astype(jnp.bfloat16)
        h1 = jnp.maximum(_mm_bf16(y_bf, w1) + b1, 0.0)
        h2 = _mm_bf16(h1.astype(jnp.bfloat16), w2) + b2
        x = _layer_norm(h2 + y, g2, be2)

    # ---- gather rows 0::WINDOW (first timestep per batch) via one-hot matmul -
    rid = lax.broadcasted_iota(jnp.int32, (SEL_ROWS, BT), 0)
    cid = lax.broadcasted_iota(jnp.int32, (SEL_ROWS, BT), 1)
    sel = (cid == rid * WINDOW).astype(jnp.bfloat16)               # rows >= B select nothing
    xr = _mm_bf16(sel, x.astype(jnp.bfloat16))                     # (SEL_ROWS, D_MODEL) f32

    # ---- head MLP + fc (weights arrive via the overlapped DMAs) -------------
    cp_w1.wait()
    cp_w2.wait()
    cp_fc.wait()

    mlp_b1 = head_b_ref[0:1, :]                                    # (1, 512)
    mlp_b2 = head_b_ref[1:2, :][:, :MLP_H[1]]                      # (1, 256)
    fc_b = head_b_ref[2:3, :][:, :OUT_PAD]                         # (1, 128)

    m1 = jnp.maximum(_mm_bf16(xr.astype(jnp.bfloat16), mlp_w1_v[...]) + mlp_b1, 0.0)
    m2 = jnp.maximum(_mm_bf16(m1.astype(jnp.bfloat16), mlp_w2_v[...]) + mlp_b2, 0.0)
    out_ref[...] = (_mm_bf16(m2.astype(jnp.bfloat16), fc_w_v[...]) + fc_b
                    ).astype(out_ref.dtype)


# ------------------------------ kernel wrapper ------------------------------
def fused_forward(dec_flat, pos_full, mask_add, p):
    vmem = pl.BlockSpec(memory_space=pltpu.MemorySpace.VMEM)
    hbm = pl.BlockSpec(memory_space=pl.ANY)
    return pl.pallas_call(
        fused_forward_kernel,
        out_shape=jax.ShapeDtypeStruct((SEL_ROWS, OUT_PAD), jnp.float32),
        in_specs=[vmem] * 10 + [hbm] * 3,
        out_specs=vmem,
        scratch_shapes=[
            pltpu.VMEM((D_MODEL, MLP_H[0]), jnp.bfloat16),
            pltpu.VMEM((MLP_H[0], MLP_H[1]), jnp.bfloat16),
            pltpu.VMEM((MLP_H[1], OUT_PAD), jnp.bfloat16),
            pltpu.SemaphoreType.DMA((3,)),
        ],
    )(dec_flat, pos_full, mask_add,
      p['emb_w'], p['qkv_w'], p['wo_w'], p['ffn1_w'], p['ffn2_w'],
      p['vec'], p['head_b'],
      p['mlp_w1'], p['mlp_w2'], p['fc_w'])


# ------------------------------ JAX glue ------------------------------------
def matrix_to_rotation_6d(rmat):
    # pytorch3d: first two rows of the rotation matrix, flattened
    return rmat[..., :2, :].reshape(rmat.shape[:-2] + (6,))


def sinusoid_pos_table(positions, d_model):
    pos = positions.astype(jnp.float32)[:, None]                      # (T, 1)
    i = jnp.arange(d_model)
    denom = jnp.power(10000.0, (2.0 * (i // 2).astype(jnp.float32)) / d_model)
    angle = pos / denom[None, :]
    return jnp.where(i[None, :] % 2 == 0, jnp.sin(angle),
                     jnp.cos(angle)).astype(jnp.float32)


def init_params(key):
    keys = iter(jax.random.split(key, 64))

    def nrm(shape, scale=0.02):
        return scale * jax.random.normal(next(keys), shape, jnp.float32)

    def pad128(v):
        return jnp.pad(v, ((0, 0), (0, 128 - v.shape[1])))

    p = {
        'emb_w': nrm((D_FEATS, D_MODEL)).astype(jnp.bfloat16),
        'emb_b': nrm((1, D_MODEL)),          # folded into the positional table
    }

    qkv_rows, wo_rows, w1_rows, w2_rows, vec_rows = [], [], [], [], []
    for _ in range(N_LAYERS):
        wq = nrm((D_MODEL, N_HEAD * D_K))
        wk = nrm((D_MODEL, N_HEAD * D_K))
        wv = nrm((D_MODEL, N_HEAD * D_V))
        qkv_rows.append(jnp.concatenate([wq, wk, wv], axis=1))        # (32, 96)
        wo_rows.append(nrm((N_HEAD * D_V, D_MODEL)))                  # (32, 32)
        w1_rows.append(nrm((D_MODEL, D_INNER)))                       # (32, 64)
        w2_rows.append(nrm((D_INNER, D_MODEL)))                       # (64, 32)

        b_qkv = nrm((1, QKV_W))
        bo = nrm((1, D_MODEL))
        g1 = jnp.ones((1, D_MODEL), jnp.float32)
        be1 = jnp.zeros((1, D_MODEL), jnp.float32)
        b1 = nrm((1, D_INNER))
        b2 = nrm((1, D_MODEL))
        g2 = jnp.ones((1, D_MODEL), jnp.float32)
        be2 = jnp.zeros((1, D_MODEL), jnp.float32)
        vec_rows += [pad128(v) for v in (b_qkv, bo, g1, be1, b1, b2, g2, be2)]

    p['qkv_w'] = jnp.concatenate(qkv_rows, axis=0).astype(jnp.bfloat16)   # (L*32, 96)
    p['wo_w'] = jnp.concatenate(wo_rows, axis=0).astype(jnp.bfloat16)     # (L*32, 32)
    p['ffn1_w'] = jnp.concatenate(w1_rows, axis=0).astype(jnp.bfloat16)   # (L*32, 64)
    p['ffn2_w'] = jnp.concatenate(w2_rows, axis=0).astype(jnp.bfloat16)   # (L*64, 32)
    p['vec'] = jnp.concatenate(vec_rows, axis=0)                          # (L*8, 128) f32

    # head MLP + fc (fc padded to 128 lanes for a lane-dense store)
    p['mlp_w1'] = nrm((D_MODEL, MLP_H[0])).astype(jnp.bfloat16)           # (32, 512)
    p['mlp_w2'] = nrm((MLP_H[0], MLP_H[1])).astype(jnp.bfloat16)          # (512, 256)
    fc_w3 = nrm((MLP_H[1], 3))
    p['fc_w'] = jnp.pad(fc_w3, ((0, 0), (0, OUT_PAD - 3))).astype(jnp.bfloat16)  # (256, 128)

    mlp_b1 = nrm((1, MLP_H[0]))                                                 # (1, 512)
    mlp_b2 = jnp.pad(nrm((1, MLP_H[1])), ((0, 0), (0, MLP_H[0] - MLP_H[1])))    # (1, 512)
    fc_b = jnp.pad(nrm((1, 3)), ((0, 0), (0, MLP_H[0] - 3)))                    # (1, 512)
    p['head_b'] = jnp.concatenate([mlp_b1, mlp_b2, fc_b], axis=0)               # (3, 512)
    return p


@jax.jit
def head_normal_former_forward(params, head_rot_mat, head_trans, seq_len):
    t = WINDOW
    rmat = head_rot_mat.astype(jnp.float32)      # (B, T+1, 3, 3)
    trans = head_trans.astype(jnp.float32)       # (B, T+1, 3)
    seq_len = seq_len.astype(jnp.float32)        # (B,)

    # --- feature prep (glue; tiny 3x3 matmuls) ---
    rot6d = matrix_to_rotation_6d(rmat)                                        # (B, T+1, 6)
    rot_diff = jnp.matmul(rmat[:, 1:], jnp.swapaxes(rmat[:, :-1], -1, -2))     # (B, T, 3, 3)
    rot_diff_6d = matrix_to_rotation_6d(rot_diff)                              # (B, T, 6)
    trans_diff = trans[:, 1:] - trans[:, :-1]                                  # (B, T, 3)
    dec_in = jnp.concatenate(
        [rot6d[:, :-1], trans[:, :-1], rot_diff_6d, trans_diff], axis=-1)      # (B, T, 18)
    dec_flat = dec_in.reshape(B * t, D_FEATS)                                  # (B*T, 18)

    # additive attention mask: key-padding (arange(T) < seq_len-1, True=attend)
    # AND block-diagonal over the flattened batch.  0 = attend, -1e9 = masked.
    # TODO(synk): verify the True=attend padding-mask convention against the
    # original (unshipped) Decoder implementation.
    valid_key = (jnp.arange(t)[None, :] < (seq_len - 1.0)[:, None]).reshape(-1)  # (B*T,)
    batch_id = jnp.arange(B * t) // t
    same_batch = batch_id[:, None] == batch_id[None, :]
    mask_add = jnp.where(same_batch & valid_key[None, :],
                         0.0, -1e9).astype(jnp.float32)                        # (B*T, B*T)

    # positional vector = arange(T)+1, sinusoidal table, tiled over batch;
    # embedding bias folded in here (one fewer kernel operand / VPU add).
    pos_table = sinusoid_pos_table(jnp.arange(1, t + 1), D_MODEL)              # (T, D)
    pos_full = jnp.tile(pos_table, (B, 1)) + params['emb_b']                   # (B*T, D)

    # --- fused transformer + head MLP (single Pallas kernel) ---
    out = fused_forward(dec_flat, pos_full, mask_add, params)                  # (8, 128)

    # seq_rnn_out[:, 0, :] -> rows 0..B-1 of the selected block; fc in lanes :3
    pred_normal = out[:B, :3]                                                  # (B, 3)
    return pred_normal


# ------------------------------ main ----------------------------------------
if __name__ == "__main__":
    key = jax.random.PRNGKey(0)
    kp, k1, k2 = jax.random.split(key, 3)
    params = init_params(kp)

    head_rot_mat = jax.random.normal(k1, (B, WINDOW + 1, 3, 3), jnp.float32)
    head_trans = jax.random.normal(k2, (B, WINDOW + 1, 3), jnp.float32)
    seq_len = jnp.array([WINDOW + 1, WINDOW - 1], jnp.float32)

    pred = head_normal_former_forward(params, head_rot_mat, head_trans, seq_len)
    pred = jax.block_until_ready(pred)
    assert pred.shape == (B, 3) and pred.dtype == jnp.float32
    assert bool(jnp.all(jnp.isfinite(pred)))
    print("KERNEL_OK")
</pallas_src>

<mosaic_0001>
module attributes {stable_mosaic.version = 11 : i64} {
  func.func @fused_forward_kernel(%arg0: memref<16x18xf32, #tpu.memory_space<vmem>>, %arg1: memref<16x32xf32, #tpu.memory_space<vmem>>, %arg2: memref<16x16xf32, #tpu.memory_space<vmem>>, %arg3: memref<18x32xbf16, #tpu.memory_space<vmem>>, %arg4: memref<64x96xbf16, #tpu.memory_space<vmem>>, %arg5: memref<64x32xbf16, #tpu.memory_space<vmem>>, %arg6: memref<64x64xbf16, #tpu.memory_space<vmem>>, %arg7: memref<128x32xbf16, #tpu.memory_space<vmem>>, %arg8: memref<16x128xf32, #tpu.memory_space<vmem>>, %arg9: memref<3x512xf32, #tpu.memory_space<vmem>>, %arg10: memref<32x512xbf16, #tpu.memory_space<any>>, %arg11: memref<512x256xbf16, #tpu.memory_space<any>>, %arg12: memref<256x128xbf16, #tpu.memory_space<any>>, %arg13: memref<8x128xf32, #tpu.memory_space<vmem>>, %arg14: memref<32x512xbf16, #tpu.memory_space<vmem>>, %arg15: memref<512x256xbf16, #tpu.memory_space<vmem>>, %arg16: memref<256x128xbf16, #tpu.memory_space<vmem>>, %arg17: memref<3x!tpu.dma_semaphore, #tpu.memory_space<semaphore_mem>>) attributes {dimension_semantics = [], scalar_prefetch = 0 : i64, scratch_operands = 4 : i64, tpu.core_type = #tpu.core_type<tc>} {
    %c0_i32 = arith.constant 0 : i32
    %0 = tpu.memref_slice %arg17[%c0_i32] : memref<3x!tpu.dma_semaphore, #tpu.memory_space<semaphore_mem>> -> memref<1x!tpu.dma_semaphore, #tpu.memory_space<semaphore_mem>>
    %1 = tpu.memref_squeeze %0 : memref<1x!tpu.dma_semaphore, #tpu.memory_space<semaphore_mem>> -> memref<!tpu.dma_semaphore, #tpu.memory_space<semaphore_mem>>
    tpu.enqueue_dma source(%arg10 : memref<32x512xbf16, #tpu.memory_space<any>>) target(%arg14 : memref<32x512xbf16, #tpu.memory_space<vmem>>) target_semaphore(%1 : memref<!tpu.dma_semaphore, #tpu.memory_space<semaphore_mem>>)
    %c1_i32 = arith.constant 1 : i32
    %2 = tpu.memref_slice %arg17[%c1_i32] : memref<3x!tpu.dma_semaphore, #tpu.memory_space<semaphore_mem>> -> memref<1x!tpu.dma_semaphore, #tpu.memory_space<semaphore_mem>>
    %3 = tpu.memref_squeeze %2 : memref<1x!tpu.dma_semaphore, #tpu.memory_space<semaphore_mem>> -> memref<!tpu.dma_semaphore, #tpu.memory_space<semaphore_mem>>
    tpu.enqueue_dma source(%arg11 : memref<512x256xbf16, #tpu.memory_space<any>>) target(%arg15 : memref<512x256xbf16, #tpu.memory_space<vmem>>) target_semaphore(%3 : memref<!tpu.dma_semaphore, #tpu.memory_space<semaphore_mem>>)
    %c2_i32 = arith.constant 2 : i32
    %4 = tpu.memref_slice %arg17[%c2_i32] : memref<3x!tpu.dma_semaphore, #tpu.memory_space<semaphore_mem>> -> memref<1x!tpu.dma_semaphore, #tpu.memory_space<semaphore_mem>>
    %5 = tpu.memref_squeeze %4 : memref<1x!tpu.dma_semaphore, #tpu.memory_space<semaphore_mem>> -> memref<!tpu.dma_semaphore, #tpu.memory_space<semaphore_mem>>
    tpu.enqueue_dma source(%arg12 : memref<256x128xbf16, #tpu.memory_space<any>>) target(%arg16 : memref<256x128xbf16, #tpu.memory_space<vmem>>) target_semaphore(%5 : memref<!tpu.dma_semaphore, #tpu.memory_space<semaphore_mem>>)
    %c0 = arith.constant 0 : index
    %c0_0 = arith.constant 0 : index
    %6 = vector.load %arg2[%c0, %c0_0] : memref<16x16xf32, #tpu.memory_space<vmem>>, vector<16x16xf32>
    %c0_1 = arith.constant 0 : index
    %c0_2 = arith.constant 0 : index
    %7 = vector.load %arg0[%c0_1, %c0_2] : memref<16x18xf32, #tpu.memory_space<vmem>>, vector<16x18xf32>
    %8 = arith.truncf %7 : vector<16x18xf32> to vector<16x18xbf16>
    %c0_3 = arith.constant 0 : index
    %c0_4 = arith.constant 0 : index
    %9 = vector.load %arg3[%c0_3, %c0_4] : memref<18x32xbf16, #tpu.memory_space<vmem>>, vector<18x32xbf16>
    %cst = arith.constant dense<0.000000e+00> : vector<16x32xf32>
    %10 = tpu.matmul %8, %9, %cst {dimension_numbers = #tpu.dot_dimension_numbers<[1], [0], [0], [1], [0, 0, 1, 1], [], []>} : vector<16x18xbf16>, vector<18x32xbf16>, vector<16x32xf32> -> vector<16x32xf32>
    %c0_5 = arith.constant 0 : index
    %c0_6 = arith.constant 0 : index
    %11 = vector.load %arg1[%c0_5, %c0_6] : memref<16x32xf32, #tpu.memory_space<vmem>>, vector<16x32xf32>
    %12 = arith.addf %10, %11 : vector<16x32xf32>
    %c0_7 = arith.constant 0 : index
    %c0_8 = arith.constant 0 : index
    %13 = vector.load %arg4[%c0_7, %c0_8] : memref<64x96xbf16, #tpu.memory_space<vmem>>, vector<32x96xbf16>
    %c0_9 = arith.constant 0 : index
    %c0_10 = arith.constant 0 : index
    %14 = vector.load %arg5[%c0_9, %c0_10] : memref<64x32xbf16, #tpu.memory_space<vmem>>, vector<32x32xbf16>
    %c0_11 = arith.constant 0 : index
    %c0_12 = arith.constant 0 : index
    %15 = vector.load %arg6[%c0_11, %c0_12] : memref<64x64xbf16, #tpu.memory_space<vmem>>, vector<32x64xbf16>
    %c0_13 = arith.constant 0 : index
    %c0_14 = arith.constant 0 : index
    %16 = vector.load %arg7[%c0_13, %c0_14] : memref<128x32xbf16, #tpu.memory_space<vmem>>, vector<64x32xbf16>
    %c0_15 = arith.constant 0 : index
    %c0_16 = arith.constant 0 : index
    %17 = vector.load %arg8[%c0_15, %c0_16] : memref<16x128xf32, #tpu.memory_space<vmem>>, vector<1x128xf32>
    %18 = vector.extract_strided_slice %17 {offsets = [0, 0], sizes = [1, 96], strides = [1, 1]} : vector<1x128xf32> to vector<1x96xf32>
    %c1 = arith.constant 1 : index
    %c0_17 = arith.constant 0 : index
    %19 = vector.load %arg8[%c1, %c0_17] : memref<16x128xf32, #tpu.memory_space<vmem>>, vector<1x128xf32>
    %20 = vector.extract_strided_slice %19 {offsets = [0, 0], sizes = [1, 32], strides = [1, 1]} : vector<1x128xf32> to vector<1x32xf32>
    %c2 = arith.constant 2 : index
    %c0_18 = arith.constant 0 : index
    %21 = vector.load %arg8[%c2, %c0_18] : memref<16x128xf32, #tpu.memory_space<vmem>>, vector<1x128xf32>
    %22 = vector.extract_strided_slice %21 {offsets = [0, 0], sizes = [1, 32], strides = [1, 1]} : vector<1x128xf32> to vector<1x32xf32>
    %c3 = arith.constant 3 : index
    %c0_19 = arith.constant 0 : index
    %23 = vector.load %arg8[%c3, %c0_19] : memref<16x128xf32, #tpu.memory_space<vmem>>, vector<1x128xf32>
    %24 = vector.extract_strided_slice %23 {offsets = [0, 0], sizes = [1, 32], strides = [1, 1]} : vector<1x128xf32> to vector<1x32xf32>
    %c4 = arith.constant 4 : index
    %c0_20 = arith.constant 0 : index
    %25 = vector.load %arg8[%c4, %c0_20] : memref<16x128xf32, #tpu.memory_space<vmem>>, vector<1x128xf32>
    %26 = vector.extract_strided_slice %25 {offsets = [0, 0], sizes = [1, 64], strides = [1, 1]} : vector<1x128xf32> to vector<1x64xf32>
    %c5 = arith.constant 5 : index
    %c0_21 = arith.constant 0 : index
    %27 = vector.load %arg8[%c5, %c0_21] : memref<16x128xf32, #tpu.memory_space<vmem>>, vector<1x128xf32>
    %28 = vector.extract_strided_slice %27 {offsets = [0, 0], sizes = [1, 32], strides = [1, 1]} : vector<1x128xf32> to vector<1x32xf32>
    %c6 = arith.constant 6 : index
    %c0_22 = arith.constant 0 : index
    %29 = vector.load %arg8[%c6, %c0_22] : memref<16x128xf32, #tpu.memory_space<vmem>>, vector<1x128xf32>
    %30 = vector.extract_strided_slice %29 {offsets = [0, 0], sizes = [1, 32], strides = [1, 1]} : vector<1x128xf32> to vector<1x32xf32>
    %c7 = arith.constant 7 : index
    %c0_23 = arith.constant 0 : index
    %31 = vector.load %arg8[%c7, %c0_23] : memref<16x128xf32, #tpu.memory_space<vmem>>, vector<1x128xf32>
    %32 = vector.extract_strided_slice %31 {offsets = [0, 0], sizes = [1, 32], strides = [1, 1]} : vector<1x128xf32> to vector<1x32xf32>
    %33 = arith.truncf %12 : vector<16x32xf32> to vector<16x32xbf16>
    %cst_24 = arith.constant dense<0.000000e+00> : vector<16x96xf32>
    %34 = tpu.matmul %33, %13, %cst_24 {dimension_numbers = #tpu.dot_dimension_numbers<[1], [0], [0], [1], [0, 0, 1, 1], [], []>} : vector<16x32xbf16>, vector<32x96xbf16>, vector<16x96xf32> -> vector<16x96xf32>
    %35 = vector.broadcast %18 : vector<1x96xf32> to vector<16x96xf32>
    %36 = arith.addf %34, %35 : vector<16x96xf32>
    %37 = vector.extract_strided_slice %36 {offsets = [0, 0], sizes = [16, 16], strides = [1, 1]} : vector<16x96xf32> to vector<16x16xf32>
    %38 = vector.extract_strided_slice %36 {offsets = [0, 32], sizes = [16, 16], strides = [1, 1]} : vector<16x96xf32> to vector<16x16xf32>
    %39 = vector.extract_strided_slice %36 {offsets = [0, 64], sizes = [16, 16], strides = [1, 1]} : vector<16x96xf32> to vector<16x16xf32>
    %cst_25 = arith.constant dense<0.000000e+00> : vector<16x16xf32>
    %40 = tpu.matmul %37, %38, %cst_25 {dimension_numbers = #tpu.dot_dimension_numbers<[1], [1], [0], [0], [0, 0, 1, 0], [], []>} : vector<16x16xf32>, vector<16x16xf32>, vector<16x16xf32> -> vector<16x16xf32>
    %cst_26 = arith.constant 2.500000e-01 : f32
    %41 = vector.broadcast %cst_26 : f32 to vector<16x16xf32>
    %42 = arith.mulf %40, %41 : vector<16x16xf32>
    %43 = arith.addf %42, %6 : vector<16x16xf32>
    %cst_27 = arith.constant dense<0xFF800000> : vector<16xf32>
    %44 = vector.multi_reduction <maximumf>, %43, %cst_27 [1] : vector<16x16xf32> to vector<16xf32>
    %45 = vector.shape_cast %44 : vector<16xf32> to vector<16x1xf32>
    %46 = vector.broadcast %45 : vector<16x1xf32> to vector<16x16xf32>
    %47 = arith.subf %43, %46 : vector<16x16xf32>
    %48 = math.exp %47 : vector<16x16xf32>
    %cst_28 = arith.constant dense<0.000000e+00> : vector<16xf32>
    %49 = vector.multi_reduction <add>, %48, %cst_28 [1] : vector<16x16xf32> to vector<16xf32>
    %50 = vector.shape_cast %49 : vector<16xf32> to vector<16x1xf32>
    %51 = tpu.reciprocal %50 {approx = true} : vector<16x1xf32> -> vector<16x1xf32>
    %52 = vector.broadcast %51 : vector<16x1xf32> to vector<16x16xf32>
    %53 = arith.mulf %48, %52 : vector<16x16xf32>
    %cst_29 = arith.constant dense<0.000000e+00> : vector<16x16xf32>
    %54 = tpu.matmul %53, %39, %cst_29 {dimension_numbers = #tpu.dot_dimension_numbers<[1], [0], [0], [1], [0, 0, 1, 1], [], []>} : vector<16x16xf32>, vector<16x16xf32>, vector<16x16xf32> -> vector<16x16xf32>
    %55 = vector.extract_strided_slice %36 {offsets = [0, 16], sizes = [16, 16], strides = [1, 1]} : vector<16x96xf32> to vector<16x16xf32>
    %56 = vector.extract_strided_slice %36 {offsets = [0, 48], sizes = [16, 16], strides = [1, 1]} : vector<16x96xf32> to vector<16x16xf32>
    %57 = vector.extract_strided_slice %36 {offsets = [0, 80], sizes = [16, 16], strides = [1, 1]} : vector<16x96xf32> to vector<16x16xf32>
    %cst_30 = arith.constant dense<0.000000e+00> : vector<16x16xf32>
    %58 = tpu.matmul %55, %56, %cst_30 {dimension_numbers = #tpu.dot_dimension_numbers<[1], [1], [0], [0], [0, 0, 1, 0], [], []>} : vector<16x16xf32>, vector<16x16xf32>, vector<16x16xf32> -> vector<16x16xf32>
    %cst_31 = arith.constant 2.500000e-01 : f32
    %59 = vector.broadcast %cst_31 : f32 to vector<16x16xf32>
    %60 = arith.mulf %58, %59 : vector<16x16xf32>
    %61 = arith.addf %60, %6 : vector<16x16xf32>
    %cst_32 = arith.constant dense<0xFF800000> : vector<16xf32>
    %62 = vector.multi_reduction <maximumf>, %61, %cst_32 [1] : vector<16x16xf32> to vector<16xf32>
    %63 = vector.shape_cast %62 : vector<16xf32> to vector<16x1xf32>
    %64 = vector.broadcast %63 : vector<16x1xf32> to vector<16x16xf32>
    %65 = arith.subf %61, %64 : vector<16x16xf32>
    %66 = math.exp %65 : vector<16x16xf32>
    %cst_33 = arith.constant dense<0.000000e+00> : vector<16xf32>
    %67 = vector.multi_reduction <add>, %66, %cst_33 [1] : vector<16x16xf32> to vector<16xf32>
    %68 = vector.shape_cast %67 : vector<16xf32> to vector<16x1xf32>
    %69 = tpu.reciprocal %68 {approx = true} : vector<16x1xf32> -> vector<16x1xf32>
    %70 = vector.broadcast %69 : vector<16x1xf32> to vector<16x16xf32>
    %71 = arith.mulf %66, %70 : vector<16x16xf32>
    %cst_34 = arith.constant dense<0.000000e+00> : vector<16x16xf32>
    %72 = tpu.matmul %71, %57, %cst_34 {dimension_numbers = #tpu.dot_dimension_numbers<[1], [0], [0], [1], [0, 0, 1, 1], [], []>} : vector<16x16xf32>, vector<16x16xf32>, vector<16x16xf32> -> vector<16x16xf32>
    %73 = tpu.concatenate %54, %72 in 1 : vector<16x16xf32>, vector<16x16xf32> -> vector<16x32xf32>
    %74 = arith.truncf %73 : vector<16x32xf32> to vector<16x32xbf16>
    %cst_35 = arith.constant dense<0.000000e+00> : vector<16x32xf32>
    %75 = tpu.matmul %74, %14, %cst_35 {dimension_numbers = #tpu.dot_dimension_numbers<[1], [0], [0], [1], [0, 0, 1, 1], [], []>} : vector<16x32xbf16>, vector<32x32xbf16>, vector<16x32xf32> -> vector<16x32xf32>
    %76 = vector.broadcast %20 : vector<1x32xf32> to vector<16x32xf32>
    %77 = arith.addf %75, %76 : vector<16x32xf32>
    %78 = arith.addf %77, %12 : vector<16x32xf32>
    %cst_36 = arith.constant dense<0.000000e+00> : vector<16xf32>
    %79 = vector.multi_reduction <add>, %78, %cst_36 [1] : vector<16x32xf32> to vector<16xf32>
    %80 = vector.shape_cast %79 : vector<16xf32> to vector<16x1xf32>
    %cst_37 = arith.constant 3.200000e+01 : f32
    %81 = vector.broadcast %cst_37 : f32 to vector<16x1xf32>
    %82 = arith.divf %80, %81 : vector<16x1xf32>
    %83 = arith.mulf %78, %78 : vector<16x32xf32>
    %cst_38 = arith.constant dense<0.000000e+00> : vector<16xf32>
    %84 = vector.multi_reduction <add>, %83, %cst_38 [1] : vector<16x32xf32> to vector<16xf32>
    %85 = vector.shape_cast %84 : vector<16xf32> to vector<16x1xf32>
    %cst_39 = arith.constant 3.200000e+01 : f32
    %86 = vector.broadcast %cst_39 : f32 to vector<16x1xf32>
    %87 = arith.divf %85, %86 : vector<16x1xf32>
    %88 = arith.mulf %82, %82 : vector<16x1xf32>
    %89 = arith.subf %87, %88 : vector<16x1xf32>
    %90 = vector.broadcast %82 : vector<16x1xf32> to vector<16x32xf32>
    %91 = arith.subf %78, %90 : vector<16x32xf32>
    %cst_40 = arith.constant 9.99999974E-6 : f32
    %92 = vector.broadcast %cst_40 : f32 to vector<16x1xf32>
    %93 = arith.addf %89, %92 : vector<16x1xf32>
    %94 = math.rsqrt %93 : vector<16x1xf32>
    %95 = vector.broadcast %94 : vector<16x1xf32> to vector<16x32xf32>
    %96 = arith.mulf %91, %95 : vector<16x32xf32>
    %97 = vector.broadcast %22 : vector<1x32xf32> to vector<16x32xf32>
    %98 = arith.mulf %96, %97 : vector<16x32xf32>
    %99 = vector.broadcast %24 : vector<1x32xf32> to vector<16x32xf32>
    %100 = arith.addf %98, %99 : vector<16x32xf32>
    %101 = arith.truncf %100 : vector<16x32xf32> to vector<16x32xbf16>
    %cst_41 = arith.constant dense<0.000000e+00> : vector<16x64xf32>
    %102 = tpu.matmul %101, %15, %cst_41 {dimension_numbers = #tpu.dot_dimension_numbers<[1], [0], [0], [1], [0, 0, 1, 1], [], []>} : vector<16x32xbf16>, vector<32x64xbf16>, vector<16x64xf32> -> vector<16x64xf32>
    %103 = vector.broadcast %26 : vector<1x64xf32> to vector<16x64xf32>
    %104 = arith.addf %102, %103 : vector<16x64xf32>
    %cst_42 = arith.constant 0.000000e+00 : f32
    %105 = vector.broadcast %cst_42 : f32 to vector<16x64xf32>
    %106 = arith.maximumf %104, %105 : vector<16x64xf32>
    %107 = arith.truncf %106 : vector<16x64xf32> to vector<16x64xbf16>
    %cst_43 = arith.constant dense<0.000000e+00> : vector<16x32xf32>
    %108 = tpu.matmul %107, %16, %cst_43 {dimension_numbers = #tpu.dot_dimension_numbers<[1], [0], [0], [1], [0, 0, 1, 1], [], []>} : vector<16x64xbf16>, vector<64x32xbf16>, vector<16x32xf32> -> vector<16x32xf32>
    %109 = vector.broadcast %28 : vector<1x32xf32> to vector<16x32xf32>
    %110 = arith.addf %108, %109 : vector<16x32xf32>
    %111 = arith.addf %110, %100 : vector<16x32xf32>
    %cst_44 = arith.constant dense<0.000000e+00> : vector<16xf32>
    %112 = vector.multi_reduction <add>, %111, %cst_44 [1] : vector<16x32xf32> to vector<16xf32>
    %113 = vector.shape_cast %112 : vector<16xf32> to vector<16x1xf32>
    %cst_45 = arith.constant 3.200000e+01 : f32
    %114 = vector.broadcast %cst_45 : f32 to vector<16x1xf32>
    %115 = arith.divf %113, %114 : vector<16x1xf32>
    %116 = arith.mulf %111, %111 : vector<16x32xf32>
    %cst_46 = arith.constant dense<0.000000e+00> : vector<16xf32>
    %117 = vector.multi_reduction <add>, %116, %cst_46 [1] : vector<16x32xf32> to vector<16xf32>
    %118 = vector.shape_cast %117 : vector<16xf32> to vector<16x1xf32>
    %cst_47 = arith.constant 3.200000e+01 : f32
    %119 = vector.broadcast %cst_47 : f32 to vector<16x1xf32>
    %120 = arith.divf %118, %119 : vector<16x1xf32>
    %121 = arith.mulf %115, %115 : vector<16x1xf32>
    %122 = arith.subf %120, %121 : vector<16x1xf32>
    %123 = vector.broadcast %115 : vector<16x1xf32> to vector<16x32xf32>
    %124 = arith.subf %111, %123 : vector<16x32xf32>
    %cst_48 = arith.constant 9.99999974E-6 : f32
    %125 = vector.broadcast %cst_48 : f32 to vector<16x1xf32>
    %126 = arith.addf %122, %125 : vector<16x1xf32>
    %127 = math.rsqrt %126 : vector<16x1xf32>
    %128 = vector.broadcast %127 : vector<16x1xf32> to vector<16x32xf32>
    %129 = arith.mulf %124, %128 : vector<16x32xf32>
    %130 = vector.broadcast %30 : vector<1x32xf32> to vector<16x32xf32>
    %131 = arith.mulf %129, %130 : vector<16x32xf32>
    %132 = vector.broadcast %32 : vector<1x32xf32> to vector<16x32xf32>
    %133 = arith.addf %131, %132 : vector<16x32xf32>
    %c32 = arith.constant 32 : index
    %c0_49 = arith.constant 0 : index
    %134 = vector.load %arg4[%c32, %c0_49] : memref<64x96xbf16, #tpu.memory_space<vmem>>, vector<32x96xbf16>
    %c32_50 = arith.constant 32 : index
    %c0_51 = arith.constant 0 : index
    %135 = vector.load %arg5[%c32_50, %c0_51] : memref<64x32xbf16, #tpu.memory_space<vmem>>, vector<32x32xbf16>
    %c32_52 = arith.constant 32 : index
    %c0_53 = arith.constant 0 : index
    %136 = vector.load %arg6[%c32_52, %c0_53] : memref<64x64xbf16, #tpu.memory_space<vmem>>, vector<32x64xbf16>
    %c64 = arith.constant 64 : index
    %c0_54 = arith.constant 0 : index
    %137 = vector.load %arg7[%c64, %c0_54] : memref<128x32xbf16, #tpu.memory_space<vmem>>, vector<64x32xbf16>
    %c8 = arith.constant 8 : index
    %c0_55 = arith.constant 0 : index
    %138 = vector.load %arg8[%c8, %c0_55] : memref<16x128xf32, #tpu.memory_space<vmem>>, vector<1x128xf32>
    %139 = vector.extract_strided_slice %138 {offsets = [0, 0], sizes = [1, 96], strides = [1, 1]} : vector<1x128xf32> to vector<1x96xf32>
    %c9 = arith.constant 9 : index
    %c0_56 = arith.constant 0 : index
    %140 = vector.load %arg8[%c9, %c0_56] : memref<16x128xf32, #tpu.memory_space<vmem>>, vector<1x128xf32>
    %141 = vector.extract_strided_slice %140 {offsets = [0, 0], sizes = [1, 32], strides = [1, 1]} : vector<1x128xf32> to vector<1x32xf32>
    %c10 = arith.constant 10 : index
    %c0_57 = arith.constant 0 : index
    %142 = vector.load %arg8[%c10, %c0_57] : memref<16x128xf32, #tpu.memory_space<vmem>>, vector<1x128xf32>
    %143 = vector.extract_strided_slice %142 {offsets = [0, 0], sizes = [1, 32], strides = [1, 1]} : vector<1x128xf32> to vector<1x32xf32>
    %c11 = arith.constant 11 : index
    %c0_58 = arith.constant 0 : index
    %144 = vector.load %arg8[%c11, %c0_58] : memref<16x128xf32, #tpu.memory_space<vmem>>, vector<1x128xf32>
    %145 = vector.extract_strided_slice %144 {offsets = [0, 0], sizes = [1, 32], strides = [1, 1]} : vector<1x128xf32> to vector<1x32xf32>
    %c12 = arith.constant 12 : index
    %c0_59 = arith.constant 0 : index
    %146 = vector.load %arg8[%c12, %c0_59] : memref<16x128xf32, #tpu.memory_space<vmem>>, vector<1x128xf32>
    %147 = vector.extract_strided_slice %146 {offsets = [0, 0], sizes = [1, 64], strides = [1, 1]} : vector<1x128xf32> to vector<1x64xf32>
    %c13 = arith.constant 13 : index
    %c0_60 = arith.constant 0 : index
    %148 = vector.load %arg8[%c13, %c0_60] : memref<16x128xf32, #tpu.memory_space<vmem>>, vector<1x128xf32>
    %149 = vector.extract_strided_slice %148 {offsets = [0, 0], sizes = [1, 32], strides = [1, 1]} : vector<1x128xf32> to vector<1x32xf32>
    %c14 = arith.constant 14 : index
    %c0_61 = arith.constant 0 : index
    %150 = vector.load %arg8[%c14, %c0_61] : memref<16x128xf32, #tpu.memory_space<vmem>>, vector<1x128xf32>
    %151 = vector.extract_strided_slice %150 {offsets = [0, 0], sizes = [1, 32], strides = [1, 1]} : vector<1x128xf32> to vector<1x32xf32>
    %c15 = arith.constant 15 : index
    %c0_62 = arith.constant 0 : index
    %152 = vector.load %arg8[%c15, %c0_62] : memref<16x128xf32, #tpu.memory_space<vmem>>, vector<1x128xf32>
    %153 = vector.extract_strided_slice %152 {offsets = [0, 0], sizes = [1, 32], strides = [1, 1]} : vector<1x128xf32> to vector<1x32xf32>
    %154 = arith.truncf %133 : vector<16x32xf32> to vector<16x32xbf16>
    %cst_63 = arith.constant dense<0.000000e+00> : vector<16x96xf32>
    %155 = tpu.matmul %154, %134, %cst_63 {dimension_numbers = #tpu.dot_dimension_numbers<[1], [0], [0], [1], [0, 0, 1, 1], [], []>} : vector<16x32xbf16>, vector<32x96xbf16>, vector<16x96xf32> -> vector<16x96xf32>
    %156 = vector.broadcast %139 : vector<1x96xf32> to vector<16x96xf32>
    %157 = arith.addf %155, %156 : vector<16x96xf32>
    %158 = vector.extract_strided_slice %157 {offsets = [0, 0], sizes = [16, 16], strides = [1, 1]} : vector<16x96xf32> to vector<16x16xf32>
    %159 = vector.extract_strided_slice %157 {offsets = [0, 32], sizes = [16, 16], strides = [1, 1]} : vector<16x96xf32> to vector<16x16xf32>
    %160 = vector.extract_strided_slice %157 {offsets = [0, 64], sizes = [16, 16], strides = [1, 1]} : vector<16x96xf32> to vector<16x16xf32>
    %cst_64 = arith.constant dense<0.000000e+00> : vector<16x16xf32>
    %161 = tpu.matmul %158, %159, %cst_64 {dimension_numbers = #tpu.dot_dimension_numbers<[1], [1], [0], [0], [0, 0, 1, 0], [], []>} : vector<16x16xf32>, vector<16x16xf32>, vector<16x16xf32> -> vector<16x16xf32>
    %cst_65 = arith.constant 2.500000e-01 : f32
    %162 = vector.broadcast %cst_65 : f32 to vector<16x16xf32>
    %163 = arith.mulf %161, %162 : vector<16x16xf32>
    %164 = arith.addf %163, %6 : vector<16x16xf32>
    %cst_66 = arith.constant dense<0xFF800000> : vector<16xf32>
    %165 = vector.multi_reduction <maximumf>, %164, %cst_66 [1] : vector<16x16xf32> to vector<16xf32>
    %166 = vector.shape_cast %165 : vector<16xf32> to vector<16x1xf32>
    %167 = vector.broadcast %166 : vector<16x1xf32> to vector<16x16xf32>
    %168 = arith.subf %164, %167 : vector<16x16xf32>
    %169 = math.exp %168 : vector<16x16xf32>
    %cst_67 = arith.constant dense<0.000000e+00> : vector<16xf32>
    %170 = vector.multi_reduction <add>, %169, %cst_67 [1] : vector<16x16xf32> to vector<16xf32>
    %171 = vector.shape_cast %170 : vector<16xf32> to vector<16x1xf32>
    %172 = tpu.reciprocal %171 {approx = true} : vector<16x1xf32> -> vector<16x1xf32>
    %173 = vector.broadcast %172 : vector<16x1xf32> to vector<16x16xf32>
    %174 = arith.mulf %169, %173 : vector<16x16xf32>
    %cst_68 = arith.constant dense<0.000000e+00> : vector<16x16xf32>
    %175 = tpu.matmul %174, %160, %cst_68 {dimension_numbers = #tpu.dot_dimension_numbers<[1], [0], [0], [1], [0, 0, 1, 1], [], []>} : vector<16x16xf32>, vector<16x16xf32>, vector<16x16xf32> -> vector<16x16xf32>
    %176 = vector.extract_strided_slice %157 {offsets = [0, 16], sizes = [16, 16], strides = [1, 1]} : vector<16x96xf32> to vector<16x16xf32>
    %177 = vector.extract_strided_slice %157 {offsets = [0, 48], sizes = [16, 16], strides = [1, 1]} : vector<16x96xf32> to vector<16x16xf32>
    %178 = vector.extract_strided_slice %157 {offsets = [0, 80], sizes = [16, 16], strides = [1, 1]} : vector<16x96xf32> to vector<16x16xf32>
    %cst_69 = arith.constant dense<0.000000e+00> : vector<16x16xf32>
    %179 = tpu.matmul %176, %177, %cst_69 {dimension_numbers = #tpu.dot_dimension_numbers<[1], [1], [0], [0], [0, 0, 1, 0], [], []>} : vector<16x16xf32>, vector<16x16xf32>, vector<16x16xf32> -> vector<16x16xf32>
    %cst_70 = arith.constant 2.500000e-01 : f32
    %180 = vector.broadcast %cst_70 : f32 to vector<16x16xf32>
    %181 = arith.mulf %179, %180 : vector<16x16xf32>
    %182 = arith.addf %181, %6 : vector<16x16xf32>
    %cst_71 = arith.constant dense<0xFF800000> : vector<16xf32>
    %183 = vector.multi_reduction <maximumf>, %182, %cst_71 [1] : vector<16x16xf32> to vector<16xf32>
    %184 = vector.shape_cast %183 : vector<16xf32> to vector<16x1xf32>
    %185 = vector.broadcast %184 : vector<16x1xf32> to vector<16x16xf32>
    %186 = arith.subf %182, %185 : vector<16x16xf32>
    %187 = math.exp %186 : vector<16x16xf32>
    %cst_72 = arith.constant dense<0.000000e+00> : vector<16xf32>
    %188 = vector.multi_reduction <add>, %187, %cst_72 [1] : vector<16x16xf32> to vector<16xf32>
    %189 = vector.shape_cast %188 : vector<16xf32> to vector<16x1xf32>
    %190 = tpu.reciprocal %189 {approx = true} : vector<16x1xf32> -> vector<16x1xf32>
    %191 = vector.broadcast %190 : vector<16x1xf32> to vector<16x16xf32>
    %192 = arith.mulf %187, %191 : vector<16x16xf32>
    %cst_73 = arith.constant dense<0.000000e+00> : vector<16x16xf32>
    %193 = tpu.matmul %192, %178, %cst_73 {dimension_numbers = #tpu.dot_dimension_numbers<[1], [0], [0], [1], [0, 0, 1, 1], [], []>} : vector<16x16xf32>, vector<16x16xf32>, vector<16x16xf32> -> vector<16x16xf32>
    %194 = tpu.concatenate %175, %193 in 1 : vector<16x16xf32>, vector<16x16xf32> -> vector<16x32xf32>
    %195 = arith.truncf %194 : vector<16x32xf32> to vector<16x32xbf16>
    %cst_74 = arith.constant dense<0.000000e+00> : vector<16x32xf32>
    %196 = tpu.matmul %195, %135, %cst_74 {dimension_numbers = #tpu.dot_dimension_numbers<[1], [0], [0], [1], [0, 0, 1, 1], [], []>} : vector<16x32xbf16>, vector<32x32xbf16>, vector<16x32xf32> -> vector<16x32xf32>
    %197 = vector.broadcast %141 : vector<1x32xf32> to vector<16x32xf32>
    %198 = arith.addf %196, %197 : vector<16x32xf32>
    %199 = arith.addf %198, %133 : vector<16x32xf32>
    %cst_75 = arith.constant dense<0.000000e+00> : vector<16xf32>
    %200 = vector.multi_reduction <add>, %199, %cst_75 [1] : vector<16x32xf32> to vector<16xf32>
    %201 = vector.shape_cast %200 : vector<16xf32> to vector<16x1xf32>
    %cst_76 = arith.constant 3.200000e+01 : f32
    %202 = vector.broadcast %cst_76 : f32 to vector<16x1xf32>
    %203 = arith.divf %201, %202 : vector<16x1xf32>
    %204 = arith.mulf %199, %199 : vector<16x32xf32>
    %cst_77 = arith.constant dense<0.000000e+00> : vector<16xf32>
    %205 = vector.multi_reduction <add>, %204, %cst_77 [1] : vector<16x32xf32> to vector<16xf32>
    %206 = vector.shape_cast %205 : vector<16xf32> to vector<16x1xf32>
    %cst_78 = arith.constant 3.200000e+01 : f32
    %207 = vector.broadcast %cst_78 : f32 to vector<16x1xf32>
    %208 = arith.divf %206, %207 : vector<16x1xf32>
    %209 = arith.mulf %203, %203 : vector<16x1xf32>
    %210 = arith.subf %208, %209 : vector<16x1xf32>
    %211 = vector.broadcast %203 : vector<16x1xf32> to vector<16x32xf32>
    %212 = arith.subf %199, %211 : vector<16x32xf32>
    %cst_79 = arith.constant 9.99999974E-6 : f32
    %213 = vector.broadcast %cst_79 : f32 to vector<16x1xf32>
    %214 = arith.addf %210, %213 : vector<16x1xf32>
    %215 = math.rsqrt %214 : vector<16x1xf32>
    %216 = vector.broadcast %215 : vector<16x1xf32> to vector<16x32xf32>
    %217 = arith.mulf %212, %216 : vector<16x32xf32>
    %218 = vector.broadcast %143 : vector<1x32xf32> to vector<16x32xf32>
    %219 = arith.mulf %217, %218 : vector<16x32xf32>
    %220 = vector.broadcast %145 : vector<1x32xf32> to vector<16x32xf32>
    %221 = arith.addf %219, %220 : vector<16x32xf32>
    %222 = arith.truncf %221 : vector<16x32xf32> to vector<16x32xbf16>
    %cst_80 = arith.constant dense<0.000000e+00> : vector<16x64xf32>
    %223 = tpu.matmul %222, %136, %cst_80 {dimension_numbers = #tpu.dot_dimension_numbers<[1], [0], [0], [1], [0, 0, 1, 1], [], []>} : vector<16x32xbf16>, vector<32x64xbf16>, vector<16x64xf32> -> vector<16x64xf32>
    %224 = vector.broadcast %147 : vector<1x64xf32> to vector<16x64xf32>
    %225 = arith.addf %223, %224 : vector<16x64xf32>
    %cst_81 = arith.constant 0.000000e+00 : f32
    %226 = vector.broadcast %cst_81 : f32 to vector<16x64xf32>
    %227 = arith.maximumf %225, %226 : vector<16x64xf32>
    %228 = arith.truncf %227 : vector<16x64xf32> to vector<16x64xbf16>
    %cst_82 = arith.constant dense<0.000000e+00> : vector<16x32xf32>
    %229 = tpu.matmul %228, %137, %cst_82 {dimension_numbers = #tpu.dot_dimension_numbers<[1], [0], [0], [1], [0, 0, 1, 1], [], []>} : vector<16x64xbf16>, vector<64x32xbf16>, vector<16x32xf32> -> vector<16x32xf32>
    %230 = vector.broadcast %149 : vector<1x32xf32> to vector<16x32xf32>
    %231 = arith.addf %229, %230 : vector<16x32xf32>
    %232 = arith.addf %231, %221 : vector<16x32xf32>
    %cst_83 = arith.constant dense<0.000000e+00> : vector<16xf32>
    %233 = vector.multi_reduction <add>, %232, %cst_83 [1] : vector<16x32xf32> to vector<16xf32>
    %234 = vector.shape_cast %233 : vector<16xf32> to vector<16x1xf32>
    %cst_84 = arith.constant 3.200000e+01 : f32
    %235 = vector.broadcast %cst_84 : f32 to vector<16x1xf32>
    %236 = arith.divf %234, %235 : vector<16x1xf32>
    %237 = arith.mulf %232, %232 : vector<16x32xf32>
    %cst_85 = arith.constant dense<0.000000e+00> : vector<16xf32>
    %238 = vector.multi_reduction <add>, %237, %cst_85 [1] : vector<16x32xf32> to vector<16xf32>
    %239 = vector.shape_cast %238 : vector<16xf32> to vector<16x1xf32>
    %cst_86 = arith.constant 3.200000e+01 : f32
    %240 = vector.broadcast %cst_86 : f32 to vector<16x1xf32>
    %241 = arith.divf %239, %240 : vector<16x1xf32>
    %242 = arith.mulf %236, %236 : vector<16x1xf32>
    %243 = arith.subf %241, %242 : vector<16x1xf32>
    %244 = vector.broadcast %236 : vector<16x1xf32> to vector<16x32xf32>
    %245 = arith.subf %232, %244 : vector<16x32xf32>
    %cst_87 = arith.constant 9.99999974E-6 : f32
    %246 = vector.broadcast %cst_87 : f32 to vector<16x1xf32>
    %247 = arith.addf %243, %246 : vector<16x1xf32>
    %248 = math.rsqrt %247 : vector<16x1xf32>
    %249 = vector.broadcast %248 : vector<16x1xf32> to vector<16x32xf32>
    %250 = arith.mulf %245, %249 : vector<16x32xf32>
    %251 = vector.broadcast %151 : vector<1x32xf32> to vector<16x32xf32>
    %252 = arith.mulf %250, %251 : vector<16x32xf32>
    %253 = vector.broadcast %153 : vector<1x32xf32> to vector<16x32xf32>
    %254 = arith.addf %252, %253 : vector<16x32xf32>
    %255 = tpu.iota {dimensions = array<i32: 0>} : vector<8x16xi32>
    %256 = tpu.iota {dimensions = array<i32: 1>} : vector<8x16xi32>
    %c8_i32 = arith.constant 8 : i32
    %257 = vector.broadcast %c8_i32 : i32 to vector<8x16xi32>
    %258 = arith.muli %255, %257 : vector<8x16xi32>
    %259 = arith.cmpi eq, %256, %258 : vector<8x16xi32>
    %260 = arith.extui %259 : vector<8x16xi1> to vector<8x16xi32>
    %261 = arith.sitofp %260 : vector<8x16xi32> to vector<8x16xf32>
    %262 = arith.truncf %261 : vector<8x16xf32> to vector<8x16xbf16>
    %263 = arith.truncf %254 : vector<16x32xf32> to vector<16x32xbf16>
    %cst_88 = arith.constant dense<0.000000e+00> : vector<8x32xf32>
    %264 = tpu.matmul %262, %263, %cst_88 {dimension_numbers = #tpu.dot_dimension_numbers<[1], [0], [0], [1], [0, 0, 1, 1], [], []>} : vector<8x16xbf16>, vector<16x32xbf16>, vector<8x32xf32> -> vector<8x32xf32>
    %c0_i32_89 = arith.constant 0 : i32
    %265 = tpu.memref_slice %arg17[%c0_i32_89] : memref<3x!tpu.dma_semaphore, #tpu.memory_space<semaphore_mem>> -> memref<1x!tpu.dma_semaphore, #tpu.memory_space<semaphore_mem>>
    %266 = tpu.memref_squeeze %265 : memref<1x!tpu.dma_semaphore, #tpu.memory_space<semaphore_mem>> -> memref<!tpu.dma_semaphore, #tpu.memory_space<semaphore_mem>>
    tpu.wait_dma2 semaphore(%266 : memref<!tpu.dma_semaphore, #tpu.memory_space<semaphore_mem>>) src(%arg10 : memref<32x512xbf16, #tpu.memory_space<any>>) dst(%arg14 : memref<32x512xbf16, #tpu.memory_space<vmem>>)
    %c1_i32_90 = arith.constant 1 : i32
    %267 = tpu.memref_slice %arg17[%c1_i32_90] : memref<3x!tpu.dma_semaphore, #tpu.memory_space<semaphore_mem>> -> memref<1x!tpu.dma_semaphore, #tpu.memory_space<semaphore_mem>>
    %268 = tpu.memref_squeeze %267 : memref<1x!tpu.dma_semaphore, #tpu.memory_space<semaphore_mem>> -> memref<!tpu.dma_semaphore, #tpu.memory_space<semaphore_mem>>
    tpu.wait_dma2 semaphore(%268 : memref<!tpu.dma_semaphore, #tpu.memory_space<semaphore_mem>>) src(%arg11 : memref<512x256xbf16, #tpu.memory_space<any>>) dst(%arg15 : memref<512x256xbf16, #tpu.memory_space<vmem>>)
    %c2_i32_91 = arith.constant 2 : i32
    %269 = tpu.memref_slice %arg17[%c2_i32_91] : memref<3x!tpu.dma_semaphore, #tpu.memory_space<semaphore_mem>> -> memref<1x!tpu.dma_semaphore, #tpu.memory_space<semaphore_mem>>
    %270 = tpu.memref_squeeze %269 : memref<1x!tpu.dma_semaphore, #tpu.memory_space<semaphore_mem>> -> memref<!tpu.dma_semaphore, #tpu.memory_space<semaphore_mem>>
    tpu.wait_dma2 semaphore(%270 : memref<!tpu.dma_semaphore, #tpu.memory_space<semaphore_mem>>) src(%arg12 : memref<256x128xbf16, #tpu.memory_space<any>>) dst(%arg16 : memref<256x128xbf16, #tpu.memory_space<vmem>>)
    %c0_92 = arith.constant 0 : index
    %c0_93 = arith.constant 0 : index
    %271 = vector.load %arg9[%c0_92, %c0_93] : memref<3x512xf32, #tpu.memory_space<vmem>>, vector<1x512xf32>
    %c1_94 = arith.constant 1 : index
    %c0_95 = arith.constant 0 : index
    %272 = vector.load %arg9[%c1_94, %c0_95] : memref<3x512xf32, #tpu.memory_space<vmem>>, vector<1x512xf32>
    %273 = vector.extract_strided_slice %272 {offsets = [0, 0], sizes = [1, 256], strides = [1, 1]} : vector<1x512xf32> to vector<1x256xf32>
    %c2_96 = arith.constant 2 : index
    %c0_97 = arith.constant 0 : index
    %274 = vector.load %arg9[%c2_96, %c0_97] : memref<3x512xf32, #tpu.memory_space<vmem>>, vector<1x512xf32>
    %275 = vector.extract_strided_slice %274 {offsets = [0, 0], sizes = [1, 128], strides = [1, 1]} : vector<1x512xf32> to vector<1x128xf32>
    %276 = arith.truncf %264 : vector<8x32xf32> to vector<8x32xbf16>
    %c0_98 = arith.constant 0 : index
    %c0_99 = arith.constant 0 : index
    %277 = vector.load %arg14[%c0_98, %c0_99] : memref<32x512xbf16, #tpu.memory_space<vmem>>, vector<32x512xbf16>
    %cst_100 = arith.constant dense<0.000000e+00> : vector<8x512xf32>
    %278 = tpu.matmul %276, %277, %cst_100 {dimension_numbers = #tpu.dot_dimension_numbers<[1], [0], [0], [1], [0, 0, 1, 1], [], []>} : vector<8x32xbf16>, vector<32x512xbf16>, vector<8x512xf32> -> vector<8x512xf32>
    %279 = vector.broadcast %271 : vector<1x512xf32> to vector<8x512xf32>
    %280 = arith.addf %278, %279 : vector<8x512xf32>
    %cst_101 = arith.constant 0.000000e+00 : f32
    %281 = vector.broadcast %cst_101 : f32 to vector<8x512xf32>
    %282 = arith.maximumf %280, %281 : vector<8x512xf32>
    %283 = arith.truncf %282 : vector<8x512xf32> to vector<8x512xbf16>
    %c0_102 = arith.constant 0 : index
    %c0_103 = arith.constant 0 : index
    %284 = vector.load %arg15[%c0_102, %c0_103] : memref<512x256xbf16, #tpu.memory_space<vmem>>, vector<512x256xbf16>
    %cst_104 = arith.constant dense<0.000000e+00> : vector<8x256xf32>
    %285 = tpu.matmul %283, %284, %cst_104 {dimension_numbers = #tpu.dot_dimension_numbers<[1], [0], [0], [1], [0, 0, 1, 1], [], []>} : vector<8x512xbf16>, vector<512x256xbf16>, vector<8x256xf32> -> vector<8x256xf32>
    %286 = vector.broadcast %273 : vector<1x256xf32> to vector<8x256xf32>
    %287 = arith.addf %285, %286 : vector<8x256xf32>
    %cst_105 = arith.constant 0.000000e+00 : f32
    %288 = vector.broadcast %cst_105 : f32 to vector<8x256xf32>
    %289 = arith.maximumf %287, %288 : vector<8x256xf32>
    %290 = arith.truncf %289 : vector<8x256xf32> to vector<8x256xbf16>
    %c0_106 = arith.constant 0 : index
    %c0_107 = arith.constant 0 : index
    %291 = vector.load %arg16[%c0_106, %c0_107] : memref<256x128xbf16, #tpu.memory_space<vmem>>, vector<256x128xbf16>
    %cst_108 = arith.constant dense<0.000000e+00> : vector<8x128xf32>
    %292 = tpu.matmul %290, %291, %cst_108 {dimension_numbers = #tpu.dot_dimension_numbers<[1], [0], [0], [1], [0, 0, 1, 1], [], []>} : vector<8x256xbf16>, vector<256x128xbf16>, vector<8x128xf32> -> vector<8x128xf32>
    %293 = vector.broadcast %275 : vector<1x128xf32> to vector<8x128xf32>
    %294 = arith.addf %292, %293 : vector<8x128xf32>
    %c0_109 = arith.constant 0 : index
    %c0_110 = arith.constant 0 : index
    %295 = vector.load %arg13[%c0_109, %c0_110] : memref<8x128xf32, #tpu.memory_space<vmem>>, vector<8x128xf32>
    tpu.vector_store %arg13[%c0_109, %c0_110], %294 {strides = array<i32>} : memref<8x128xf32, #tpu.memory_space<vmem>>, vector<8x128xf32>,
    return
  }
}

</mosaic_0001>

<llo_original>
// kernel: head_normal_former_forward.1
$region0: #{head_normal_former_forward.1}
  #allocation0 [shape = 'u32[]', space=smem, size = 0x4, offset = 0x4, fixed_abs, tag = 'smem constant byte address 0x4 - core index']
  #allocation1 [shape = 'u32[72,128]{1,0:T(1,128)}', space=vmem, size = 0x9000, scoped, tag = 'internal scratch']
  #allocation2 [shape = 'bf16[32,512]{1,0:T(8,128)(2,1)}', space=vmem, size = 0x8000, scoped, tag = 'scratch operand']
  #allocation3 [shape = 'bf16[512,256]{1,0:T(8,128)(2,1)}', space=vmem, size = 0x40000, scoped, tag = 'scratch operand']
  #allocation4 [shape = 'bf16[256,128]{1,0:T(8,128)(2,1)}', space=vmem, size = 0x10000, scoped, tag = 'scratch operand']
  #allocation5 [shape = 's32[3]{0}', space=sflag, size = 0xc, scoped, tag = 'scratch operand']
  #allocation6 [shape = 's32[]', space=sflag, size = 0x4, offset = 0, fixed_abs, tag = 'sflag constant byte address 0x0 - dummy sync flag']
  #allocation7 [shape = 's32[]', space=sflag, size = 0x4, offset = 0, fixed_abs, tag = 'sflag constant byte address 0x0 - dummy sync flag']
  #allocation8 [shape = 's32[]', space=sflag, size = 0x4, offset = 0, fixed_abs, tag = 'sflag constant byte address 0x0 - dummy sync flag']
  #allocation9 [shape = 'u32[]', space=smem, size = 0x4, offset = 0x44, fixed_abs, tag = 'smem constant byte address 0x44 - assertion arg 0']
  #allocation10 [shape = 'u32[]', space=smem, size = 0x4, offset = 0x48, fixed_abs, tag = 'smem constant byte address 0x48 - assertion arg 1']
  #allocation11 [shape = 's32[]', space=sflag, size = 0x4, offset = 0, fixed_abs, tag = 'sflag constant byte address 0x0 - dummy sync flag']
  %s0 = inlined_call_operand.vmem [shape: f32[16,18], index: 0, kind: input, shape index: {}]
  %s1 = inlined_call_operand.vmem [shape: f32[16,32], index: 1, kind: input, shape index: {}]
  %s2 = inlined_call_operand.vmem [shape: f32[16,16], index: 2, kind: input, shape index: {}]
  %s3 = inlined_call_operand.vmem [shape: bf16[18,32], index: 3, kind: input, shape index: {}]
  %s4 = inlined_call_operand.vmem [shape: bf16[64,96], index: 4, kind: input, shape index: {}]
  %s5 = inlined_call_operand.vmem [shape: bf16[64,32], index: 5, kind: input, shape index: {}]
  %s6 = inlined_call_operand.vmem [shape: bf16[64,64], index: 6, kind: input, shape index: {}]
  %s7 = inlined_call_operand.vmem [shape: bf16[128,32], index: 7, kind: input, shape index: {}]
  %s8 = inlined_call_operand.vmem [shape: f32[16,128], index: 8, kind: input, shape index: {}]
  %s9 = inlined_call_operand.vmem [shape: f32[3,512], index: 9, kind: input, shape index: {}]
  %s10 = inlined_call_operand.vmem [shape: bf16[32,512], index: 10, kind: input, shape index: {}]
  %s11 = inlined_call_operand.hbm [shape: bf16[512,256], index: 11, kind: input, shape index: {}]
  %s12 = inlined_call_operand.vmem [shape: bf16[256,128], index: 12, kind: input, shape index: {}]
  %s13 = inlined_call_operand.vmem [shape: f32[8,128], index: 13, kind: output, shape index: {}]
  %s14 = sld [smem:[#allocation0]]
  $region92: #{head_normal_former_forward.1} parent=0
    _
  %s16 = ssub.s32 1, %s14
  %s17 = scalar_select 0, %s16, %s14
  // Predicated region
  $region2: #{head_normal_former_forward.1} parent=0 // pred_check
    _
  $region3: #{head_normal_former_forward.1} parent=0 // pred_check_branch
    %19 = sbr.rel (0) target = $region5
  $region4: #{head_normal_former_forward.1} parent=0 // pred_region
    _
  $region5: #{head_normal_former_forward.1} parent=0 // pred_fallthru
    _
  // Predicated region
  $region6: #{head_normal_former_forward.1} parent=0 // pred_check
    _
  $region7: #{head_normal_former_forward.1} parent=0 // pred_check_branch
    %21 = sbr.rel (0) target = $region9
  $region8: #{head_normal_former_forward.1} parent=0 // pred_region
    _
  $region9: #{head_normal_former_forward.1} parent=0 // pred_fallthru
    _
  // Predicated region
  $region10: #{head_normal_former_forward.1} parent=0 // pred_check
    _
  $region11: #{head_normal_former_forward.1} parent=0 // pred_check_branch
    %23 = sbr.rel (0) target = $region13
  $region12: #{head_normal_former_forward.1} parent=0 // pred_region
    _
  $region13: #{head_normal_former_forward.1} parent=0 // pred_fallthru
    _
  // Predicated region
  $region14: #{head_normal_former_forward.1} parent=0 // pred_check
    _
  $region15: #{head_normal_former_forward.1} parent=0 // pred_check_branch
    %25 = sbr.rel (0) target = $region17
  $region16: #{head_normal_former_forward.1} parent=0 // pred_region
    _
  $region17: #{head_normal_former_forward.1} parent=0 // pred_fallthru
    _
  // Predicated region
  $region18: #{head_normal_former_forward.1} parent=0 // pred_check
    _
  $region19: #{head_normal_former_forward.1} parent=0 // pred_check_branch
    %27 = sbr.rel (0) target = $region21
  $region20: #{head_normal_former_forward.1} parent=0 // pred_region
    _
  $region21: #{head_normal_former_forward.1} parent=0 // pred_fallthru
    _
  // Predicated region
  $region22: #{head_normal_former_forward.1} parent=0 // pred_check
    _
  $region23: #{head_normal_former_forward.1} parent=0 // pred_check_branch
    %29 = sbr.rel (0) target = $region25
  $region24: #{head_normal_former_forward.1} parent=0 // pred_region
    _
  $region25: #{head_normal_former_forward.1} parent=0 // pred_fallthru
    _
  // Predicated region
  $region26: #{head_normal_former_forward.1} parent=0 // pred_check
    _
  $region27: #{head_normal_former_forward.1} parent=0 // pred_check_branch
    %31 = sbr.rel (0) target = $region29
  $region28: #{head_normal_former_forward.1} parent=0 // pred_region
    _
  $region29: #{head_normal_former_forward.1} parent=0 // pred_fallthru
    _
  // Predicated region
  $region30: #{head_normal_former_forward.1} parent=0 // pred_check
    _
  $region31: #{head_normal_former_forward.1} parent=0 // pred_check_branch
    %33 = sbr.rel (0) target = $region33
  $region32: #{head_normal_former_forward.1} parent=0 // pred_region
    _
  $region33: #{head_normal_former_forward.1} parent=0 // pred_fallthru
    _
  // Predicated region
  $region34: #{head_normal_former_forward.1} parent=0 // pred_check
    _
  $region35: #{head_normal_former_forward.1} parent=0 // pred_check_branch
    %35 = sbr.rel (0) target = $region37
  $region36: #{head_normal_former_forward.1} parent=0 // pred_region
    _
  $region37: #{head_normal_former_forward.1} parent=0 // pred_fallthru
    _
  // Predicated region
  $region38: #{head_normal_former_forward.1} parent=0 // pred_check
    _
  $region39: #{head_normal_former_forward.1} parent=0 // pred_check_branch
    %37 = sbr.rel (0) target = $region41
  $region40: #{head_normal_former_forward.1} parent=0 // pred_region
    _
  $region41: #{head_normal_former_forward.1} parent=0 // pred_fallthru
    _
  // Predicated region
  $region42: #{head_normal_former_forward.1} parent=0 // pred_check
    _
  $region43: #{head_normal_former_forward.1} parent=0 // pred_check_branch
    %40 = sbr.rel (0) target = $region45
  $region44: #{head_normal_former_forward.1} parent=0 // pred_region
    loop: start=0, step=1, limit=1
    $region46: #{head_normal_former_forward.1} parent=44 // loop_pre_header
      _
    $region47: #{head_normal_former_forward.1} parent=44 // loop_header
      %s42 = sphi 0, %s46
      %p43 = scmp.ge.s32.totalorder %s42, 1
      %s47 = sphi %s10, %s10
      %s48 = sphi [#allocation2], [#allocation2]
    $region48: #{head_normal_former_forward.1} parent=44 // loop_header_branch
      %45 = sbr.rel (%p43) target = $region52
    $region49: #{head_normal_former_forward.1} parent=44 // loop_body
      %v49 = vld [vmem:[%s47] sm:$0xff]
      %50 = vst [vmem:[%s48] sm:$0xff] %v49
      %v51 = vld [vmem:[%s47 + $0x8] sm:$0xff]
      %52 = vst [vmem:[%s48 + $0x8] sm:$0xff] %v51
      %v53 = vld [vmem:[%s47 + $0x10] sm:$0xff]
      %54 = vst [vmem:[%s48 + $0x10] sm:$0xff] %v53
      %v55 = vld [vmem:[%s47 + $0x18] sm:$0xff]
      %56 = vst [vmem:[%s48 + $0x18] sm:$0xff] %v55
      %v57 = vld [vmem:[%s47 + $0x20] sm:$0xff]
      %58 = vst [vmem:[%s48 + $0x20] sm:$0xff] %v57
      %v59 = vld [vmem:[%s47 + $0x28] sm:$0xff]
      %60 = vst [vmem:[%s48 + $0x28] sm:$0xff] %v59
      %v61 = vld [vmem:[%s47 + $0x30] sm:$0xff]
      %62 = vst [vmem:[%s48 + $0x30] sm:$0xff] %v61
      %v63 = vld [vmem:[%s47 + $0x38] sm:$0xff]
      %64 = vst [vmem:[%s48 + $0x38] sm:$0xff] %v63
    $region50: #{head_normal_former_forward.1} parent=44 // loop_footer
      %s46 = sadd.s32 1, %s42
    $region51: #{head_normal_former_forward.1} parent=44 // loop_footer_branch
      %41 = sbr.rel target = $region47
    $region52: #{head_normal_former_forward.1} parent=44 // loop_exit
      _
  $region45: #{head_normal_former_forward.1} parent=0 // pred_fallthru
    _
  // Predicated region
  $region53: #{head_normal_former_forward.1} parent=0 // pred_check
    _
  $region54: #{head_normal_former_forward.1} parent=0 // pred_check_branch
    %66 = sbr.rel target = $region56
  $region55: #{head_normal_former_forward.1} parent=0 // pred_region
    _
  $region56: #{head_normal_former_forward.1} parent=0 // pred_fallthru
    _
  // Predicated region
  $region57: #{head_normal_former_forward.1} parent=0 // pred_check
    _
  $region58: #{head_normal_former_forward.1} parent=0 // pred_check_branch
    %69 = sbr.rel (0) target = $region60
  $region59: #{head_normal_former_forward.1} parent=0 // pred_region
    %70 = vsyncadd [#allocation5], 1024
  $region60: #{head_normal_former_forward.1} parent=0 // pred_fallthru
    _
  %s71 = scalar_lea.sflag [#allocation5], 1
  // Predicated region
  $region61: #{head_normal_former_forward.1} parent=0 // pred_check
    _
  $region62: #{head_normal_former_forward.1} parent=0 // pred_check_branch
    %73 = sbr.rel target = $region64
  $region63: #{head_normal_former_forward.1} parent=0 // pred_region
    %74 = sst [smem:[#allocation9]] [#allocation8]
    %75 = sst [smem:[#allocation10]] [#allocation7]
  $region64: #{head_normal_former_forward.1} parent=0 // pred_fallthru
    _
  %77 = shalt.err (0)
  %s79 = sshll.u32 %s11, 4
  %s80 = int_to_ptr.hbm [resolvable:$true] %s79
  %s81 = sshll.u32 [#allocation3], 4
  %s82 = int_to_ptr.vmem [resolvable:$true] %s81
  %84 = dma.hbm_to_vmem [thread:$0]  %s80, 8192, %s82, %s71
  %s85 = scalar_lea.sflag [#allocation5], 2
  // Predicated region
  $region65: #{head_normal_former_forward.1} parent=0 // pred_check
    _
  $region66: #{head_normal_former_forward.1} parent=0 // pred_check_branch
    %87 = sbr.rel (0) target = $region68
  $region67: #{head_normal_former_forward.1} parent=0 // pred_region
    loop: start=0, step=1, limit=1
    $region69: #{head_normal_former_forward.1} parent=67 // loop_pre_header
      _
    $region70: #{head_normal_former_forward.1} parent=67 // loop_header
      %s89 = sphi 0, %s93
      %p90 = scmp.ge.s32.totalorder %s89, 1
      %s94 = sphi %s12, %s12
      %s95 = sphi [#allocation4], [#allocation4]
    $region71: #{head_normal_former_forward.1} parent=67 // loop_header_branch
      %92 = sbr.rel (%p90) target = $region75
    $region72: #{head_normal_former_forward.1} parent=67 // loop_body
      %v96 = vld [vmem:[%s94] sm:$0xff]
      %97 = vst [vmem:[%s95] sm:$0xff] %v96
      %v98 = vld [vmem:[%s94 + $0x8] sm:$0xff]
      %99 = vst [vmem:[%s95 + $0x8] sm:$0xff] %v98
      %v100 = vld [vmem:[%s94 + $0x10] sm:$0xff]
      %101 = vst [vmem:[%s95 + $0x10] sm:$0xff] %v100
      %v102 = vld [vmem:[%s94 + $0x18] sm:$0xff]
      %103 = vst [vmem:[%s95 + $0x18] sm:$0xff] %v102
      %v104 = vld [vmem:[%s94 + $0x20] sm:$0xff]
      %105 = vst [vmem:[%s95 + $0x20] sm:$0xff] %v104
      %v106 = vld [vmem:[%s94 + $0x28] sm:$0xff]
      %107 = vst [vmem:[%s95 + $0x28] sm:$0xff] %v106
      %v108 = vld [vmem:[%s94 + $0x30] sm:$0xff]
      %109 = vst [vmem:[%s95 + $0x30] sm:$0xff] %v108
      %v110 = vld [vmem:[%s94 + $0x38] sm:$0xff]
      %111 = vst [vmem:[%s95 + $0x38] sm:$0xff] %v110
      %v112 = vld [vmem:[%s94 + $0x40] sm:$0xff]
      %113 = vst [vmem:[%s95 + $0x40] sm:$0xff] %v112
      %v114 = vld [vmem:[%s94 + $0x48] sm:$0xff]
      %115 = vst [vmem:[%s95 + $0x48] sm:$0xff] %v114
      %v116 = vld [vmem:[%s94 + $0x50] sm:$0xff]
      %117 = vst [vmem:[%s95 + $0x50] sm:$0xff] %v116
      %v118 = vld [vmem:[%s94 + $0x58] sm:$0xff]
      %119 = vst [vmem:[%s95 + $0x58] sm:$0xff] %v118
      %v120 = vld [vmem:[%s94 + $0x60] sm:$0xff]
      %121 = vst [vmem:[%s95 + $0x60] sm:$0xff] %v120
      %v122 = vld [vmem:[%s94 + $0x68] sm:$0xff]
      %123 = vst [vmem:[%s95 + $0x68] sm:$0xff] %v122
      %v124 = vld [vmem:[%s94 + $0x70] sm:$0xff]
      %125 = vst [vmem:[%s95 + $0x70] sm:$0xff] %v124
      %v126 = vld [vmem:[%s94 + $0x78] sm:$0xff]
      %127 = vst [vmem:[%s95 + $0x78] sm:$0xff] %v126
    $region73: #{head_normal_former_forward.1} parent=67 // loop_footer
      %s93 = sadd.s32 1, %s89
    $region74: #{head_normal_former_forward.1} parent=67 // loop_footer_branch
      %88 = sbr.rel target = $region70
    $region75: #{head_normal_former_forward.1} parent=67 // loop_exit
      _
  $region68: #{head_normal_former_forward.1} parent=0 // pred_fallthru
    _
  // Predicated region
  $region76: #{head_normal_former_forward.1} parent=0 // pred_check
    _
  $region77: #{head_normal_former_forward.1} parent=0 // pred_check_branch
    %129 = sbr.rel target = $region79
  $region78: #{head_normal_former_forward.1} parent=0 // pred_region
    _
  $region79: #{head_normal_former_forward.1} parent=0 // pred_fallthru
    _
  // Predicated region
  $region80: #{head_normal_former_forward.1} parent=0 // pred_check
    _
  $region81: #{head_normal_former_forward.1} parent=0 // pred_check_branch
    %132 = sbr.rel (0) target = $region83
  $region82: #{head_normal_former_forward.1} parent=0 // pred_region
    %133 = vsyncadd %s85, 2048
  $region83: #{head_normal_former_forward.1} parent=0 // pred_fallthru
    _
  %v134 = vld [vmem:[%s2] sm:$0xff]
  %v135 = vld [vmem:[%s2 + $0x8] sm:$0xff]
  %v136 = vld [vmem:[%s0] sm:$0xff]
  %v137 = vld [vmem:[%s0 + $0x8] sm:$0xff]
  %v138 = vpack.c.bf16 %v137, %v136
  %v139 = vld [vmem:[%s3] sm:$0xf]
  %v140 = vld [vmem:[%s3 + $0x4] sm:$0xf]
  %v141 = vld [vmem:[%s3 + $0x8] sm:$0x1]
  %v142 = vld [vmem:[%s1] sm:$0xff]
  %v143 = vld [vmem:[%s1 + $0x8] sm:$0xff]
  %v147 = vunpack.c.l.b16 %v139
  %v148 = vunpack.c.l.b16 %v140
  %v149 = vunpack.c.l.b16 %v141
  %v150 = vpack.c.b16 %v148, %v147
  %v151 = vpack.c.b16 %v149, %v149
  %vm153 = vcmask 146432
  %v155 = vsel %vm153, %v138, 0
  %vm157 = vcmask 1040384
  %v159 = vsel %vm157, %v151, 0
  %161 = vmatpush.bf16.msra.mxu0 0
  %162 = vmatpush.bf16.msra.mxu0 0
  %163 = vmatpush.bf16.msra.mxu0 0
  %164 = vmatpush.bf16.msra.mxu0 0
  %165 = vmatpush.bf16.msra.mxu0 0
  %166 = vmatpush.bf16.msra.mxu0 0
  %167 = vmatpush.bf16.msra.mxu0 %v159
  %168 = vmatpush.bf16.msra.mxu0 %v150
  %169 = vmatmul.bf16.gmra.mxu0 %v155
  %v170 = vpop.f32.mrf.mxu0
  %v171 = vadd.f32 %v142, %v170
  %v172 = vpop.f32.mrf.mxu0
  %v173 = vadd.f32 %v143, %v172
  %174 = vdwg.mxu0
  %v175 = vld [vmem:[%s4] sm:$0xf]
  %v176 = vld [vmem:[%s4 + $0x4] sm:$0xf]
  %v177 = vld [vmem:[%s4 + $0x8] sm:$0xf]
  %v178 = vld [vmem:[%s4 + $0xc] sm:$0xf]
  %v179 = vld [vmem:[%s5] sm:$0xf]
  %v180 = vld [vmem:[%s5 + $0x4] sm:$0xf]
  %v181 = vld [vmem:[%s5 + $0x8] sm:$0xf]
  %v182 = vld [vmem:[%s5 + $0xc] sm:$0xf]
  %v183 = vld [vmem:[%s6] sm:$0xf]
  %v184 = vld [vmem:[%s6 + $0x4] sm:$0xf]
  %v185 = vld [vmem:[%s6 + $0x8] sm:$0xf]
  %v186 = vld [vmem:[%s6 + $0xc] sm:$0xf]
  %v187 = vld [vmem:[%s7] sm:$0xf]
  %v188 = vld [vmem:[%s7 + $0x4] sm:$0xf]
  %v189 = vld [vmem:[%s7 + $0x8] sm:$0xf]
  %v190 = vld [vmem:[%s7 + $0xc] sm:$0xf]
  %v191 = vld [vmem:[%s7 + $0x10] sm:$0xf]
  %v192 = vld [vmem:[%s7 + $0x14] sm:$0xf]
  %v193 = vld [vmem:[%s7 + $0x18] sm:$0xf]
  %v194 = vld [vmem:[%s7 + $0x1c] sm:$0xf]
  %v195 = vld [vmem:[%s8] sm:$0x1]
  %v196 = vld [vmem:[%s8 + $0x1] sm:$0x1]
  %v197 = vld [vmem:[%s8 + $0x2] sm:$0x1]
  %v198 = vld [vmem:[%s8 + $0x3] sm:$0x1]
  %v199 = vld [vmem:[%s8 + $0x4] sm:$0x1]
  %v200 = vld [vmem:[%s8 + $0x5] sm:$0x1]
  %v201 = vld [vmem:[%s8 + $0x6] sm:$0x1]
  %v202 = vld [vmem:[%s8 + $0x7] sm:$0x1]
  %v203 = vpack.c.bf16 %v173, %v171
  %v204 = vperm.slane %v195, 0
  %v209 = vunpack.c.l.b16 %v175
  %v210 = vunpack.c.l.b16 %v176
  %v211 = vunpack.c.l.b16 %v177
  %v212 = vunpack.c.l.b16 %v178
  %v213 = vpack.c.b16 %v210, %v209
  %v214 = vpack.c.b16 %v212, %v211
  %vm217 = vcmask 261120
  %v219 = vsel %vm217, %v203, 0
  %221 = vmatpush.bf16.msra.mxu0 0
  %222 = vmatpush.bf16.msra.mxu0 0
  %223 = vmatpush.bf16.msra.mxu0 0
  %224 = vmatpush.bf16.msra.mxu0 0
  %225 = vmatpush.bf16.msra.mxu0 0
  %226 = vmatpush.bf16.msra.mxu0 0
  %227 = vmatpush.bf16.msra.mxu0 %v214
  %228 = vmatpush.bf16.msra.mxu0 %v213
  %229 = vmatmul.bf16.gmra.mxu0 %v219
  %v230 = vpop.f32.mrf.mxu0
  %v231 = vadd.f32 %v204, %v230
  %v232 = vpop.f32.mrf.mxu0
  %v233 = vadd.f32 %v204, %v232
  %234 = vdwg.mxu0
  %237 = vrot.lane.b32.xlu0 %v231, 96
  %v238 = vpop.permute.xlu0 %237
  %239 = vrot.lane.b32.xlu0 %v233, 96
  %v240 = vpop.permute.xlu0 %239
  %vm241 = vcmask 130048
  %v242 = vsel %vm241, %v231, 0
  %v244 = vsel %vm241, %v233, 0
  %v246 = vsel %vm241, %v238, 0
  %v248 = vsel %vm241, %v240, 0
  %250 = vmatpush.xpose.msra.mxu0 0.0
  %251 = vmatpush.xpose.msra.mxu0 0.0
  %252 = vmatpush.xpose.msra.mxu0 0.0
  %253 = vmatpush.xpose.msra.mxu0 0.0
  %254 = vmatpush.xpose.msra.mxu0 0.0
  %255 = vmatpush.xpose.msra.mxu0 0.0
  %256 = vmatpush.xpose.msra.mxu0 0.0
  %257 = vmatpush.xpose.msra.mxu0 0.0
  %258 = vmatpush.xpose.msra.mxu0 0.0
  %259 = vmatpush.xpose.msra.mxu0 0.0
  %260 = vmatpush.xpose.msra.mxu0 0.0
  %261 = vmatpush.xpose.msra.mxu0 0.0
  %262 = vmatpush.xpose.msra.mxu0 0.0
  %263 = vmatpush.xpose.msra.mxu0 0.0
  %264 = vmatpush.xpose.msra.mxu0 %v248
  %265 = vmatpush.xpose.msra.mxu0 %v246
  %266 = vmatmul.f32.gmra.mxu0 %v242
  %v267 = vpop.f32.mrf.mxu0
  %v268 = vadd.f32 0.0, %v267
  %269 = vmatmul.f32.gmra.mxu0 %v244
  %v270 = vpop.f32.mrf.mxu0
  %v271 = vadd.f32 0.0, %v270
  %272 = vdwg.mxu0
  %v273 = vmul.f32 %v268, 0.25
  %v274 = vmul.f32 %v271, 0.25
  %v275 = vadd.f32 %v273, %v134
  %v276 = vadd.f32 %v274, %v135
  %v277 = vsel %vm241, %v275, -inf
  %278 = vmax.xlane.f32.xlu0 %v277
  %v279 = vpop.xlane.xlu0 %278
  %v280 = vsel %vm241, %v276, -inf
  %281 = vmax.xlane.f32.xlu0 %v280
  %v282 = vpop.xlane.xlu0 %281
  %v283 = vsub.f32 %v275, %v279
  %v284 = vsub.f32 %v276, %v282
  %v285 = vmul.f32 %v283, 1.442695
  %v286 = vpow.pop %v285
  %v287 = vmul.f32 %v284, 1.442695
  %v288 = vpow.pop %v287
  %v289 = vsel %vm241, %v286, 0.0
  %290 = vadd.xlane.f32.xlu0 %v289
  %v291 = vpop.xlane.xlu0 %290
  %v292 = vsel %vm241, %v288, 0.0
  %293 = vadd.xlane.f32.xlu0 %v292
  %v294 = vpop.xlane.xlu0 %293
  %v295 = vrcp.pop %v291
  %v296 = vrcp.pop %v294
  %v297 = vmul.f32 %v286, %v295
  %v298 = vmul.f32 %v288, %v296
  %299 = vrot.lane.b32.xlu0 %v231, 64
  %v300 = vpop.permute.xlu0 %299
  %301 = vrot.lane.b32.xlu0 %v233, 64
  %v302 = vpop.permute.xlu0 %301
  %v306 = vsel %vm241, %v297, 0
  %v309 = vsel %vm241, %v298, 0
  %311 = vmatpush.msra.mxu0 0.0
  %312 = vmatpush.msra.mxu0 0.0
  %313 = vmatpush.msra.mxu0 0.0
  %314 = vmatpush.msra.mxu0 0.0
  %315 = vmatpush.msra.mxu0 0.0
  %316 = vmatpush.msra.mxu0 0.0
  %317 = vmatpush.msra.mxu0 0.0
  %318 = vmatpush.msra.mxu0 0.0
  %319 = vmatpush.msra.mxu0 0.0
  %320 = vmatpush.msra.mxu0 0.0
  %321 = vmatpush.msra.mxu0 0.0
  %322 = vmatpush.msra.mxu0 0.0
  %323 = vmatpush.msra.mxu0 0.0
  %324 = vmatpush.msra.mxu0 0.0
  %325 = vmatpush.msra.mxu0 %v302
  %326 = vmatpush.msra.mxu0 %v300
  %327 = vmatmul.f32.gmra.mxu0 %v306
  %v328 = vpop.f32.mrf.mxu0
  %v329 = vadd.f32 0.0, %v328
  %330 = vmatmul.f32.gmra.mxu0 %v309
  %v331 = vpop.f32.mrf.mxu0
  %v332 = vadd.f32 0.0, %v331
  %333 = vdwg.mxu0
  %334 = vrot.lane.b32.xlu0 %v231, 112
  %v335 = vpop.permute.xlu0 %334
  %336 = vrot.lane.b32.xlu0 %v233, 112
  %v337 = vpop.permute.xlu0 %336
  %338 = vrot.lane.b32.xlu0 %v231, 80
  %v339 = vpop.permute.xlu0 %338
  %340 = vrot.lane.b32.xlu0 %v233, 80
  %v341 = vpop.permute.xlu0 %340
  %v342 = vsel %vm241, %v335, 0
  %v344 = vsel %vm241, %v337, 0
  %v346 = vsel %vm241, %v339, 0
  %v348 = vsel %vm241, %v341, 0
  %350 = vmatpush.xpose.msra.mxu0 0.0
  %351 = vmatpush.xpose.msra.mxu0 0.0
  %352 = vmatpush.xpose.msra.mxu0 0.0
  %353 = vmatpush.xpose.msra.mxu0 0.0
  %354 = vmatpush.xpose.msra.mxu0 0.0
  %355 = vmatpush.xpose.msra.mxu0 0.0
  %356 = vmatpush.xpose.msra.mxu0 0.0
  %357 = vmatpush.xpose.msra.mxu0 0.0
  %358 = vmatpush.xpose.msra.mxu0 0.0
  %359 = vmatpush.xpose.msra.mxu0 0.0
  %360 = vmatpush.xpose.msra.mxu0 0.0
  %361 = vmatpush.xpose.msra.mxu0 0.0
  %362 = vmatpush.xpose.msra.mxu0 0.0
  %363 = vmatpush.xpose.msra.mxu0 0.0
  %364 = vmatpush.xpose.msra.mxu0 %v348
  %365 = vmatpush.xpose.msra.mxu0 %v346
  %366 = vmatmul.f32.gmra.mxu0 %v342
  %v367 = vpop.f32.mrf.mxu0
  %v368 = vadd.f32 0.0, %v367
  %369 = vmatmul.f32.gmra.mxu0 %v344
  %v370 = vpop.f32.mrf.mxu0
  %v371 = vadd.f32 0.0, %v370
  %372 = vdwg.mxu0
  %v373 = vmul.f32 %v368, 0.25
  %v374 = vmul.f32 %v371, 0.25
  %v375 = vadd.f32 %v373, %v134
  %v376 = vadd.f32 %v374, %v135
  %v377 = vsel %vm241, %v375, -inf
  %378 = vmax.xlane.f32.xlu0 %v377
  %v379 = vpop.xlane.xlu0 %378
  %v380 = vsel %vm241, %v376, -inf
  %381 = vmax.xlane.f32.xlu0 %v380
  %v382 = vpop.xlane.xlu0 %381
  %v383 = vsub.f32 %v375, %v379
  %v384 = vsub.f32 %v376, %v382
  %v385 = vmul.f32 %v383, 1.442695
  %v386 = vpow.pop %v385
  %v387 = vmul.f32 %v384, 1.442695
  %v388 = vpow.pop %v387
  %v389 = vsel %vm241, %v386, 0.0
  %390 = vadd.xlane.f32.xlu0 %v389
  %v391 = vpop.xlane.xlu0 %390
  %v392 = vsel %vm241, %v388, 0.0
  %393 = vadd.xlane.f32.xlu0 %v392
  %v394 = vpop.xlane.xlu0 %393
  %v395 = vrcp.pop %v391
  %v396 = vrcp.pop %v394
  %v397 = vmul.f32 %v386, %v395
  %v398 = vmul.f32 %v388, %v396
  %399 = vrot.lane.b32.xlu0 %v231, 48
  %v400 = vpop.permute.xlu0 %399
  %401 = vrot.lane.b32.xlu0 %v233, 48
  %v402 = vpop.permute.xlu0 %401
  %v406 = vsel %vm241, %v397, 0
  %v409 = vsel %vm241, %v398, 0
  %411 = vmatpush.msra.mxu0 0.0
  %412 = vmatpush.msra.mxu0 0.0
  %413 = vmatpush.msra.mxu0 0.0
  %414 = vmatpush.msra.mxu0 0.0
  %415 = vmatpush.msra.mxu0 0.0
  %416 = vmatpush.msra.mxu0 0.0
  %417 = vmatpush.msra.mxu0 0.0
  %418 = vmatpush.msra.mxu0 0.0
  %419 = vmatpush.msra.mxu0 0.0
  %420 = vmatpush.msra.mxu0 0.0
  %421 = vmatpush.msra.mxu0 0.0
  %422 = vmatpush.msra.mxu0 0.0
  %423 = vmatpush.msra.mxu0 0.0
  %424 = vmatpush.msra.mxu0 0.0
  %425 = vmatpush.msra.mxu0 %v402
  %426 = vmatpush.msra.mxu0 %v400
  %427 = vmatmul.f32.gmra.mxu0 %v406
  %v428 = vpop.f32.mrf.mxu0
  %v429 = vadd.f32 0.0, %v428
  %430 = vmatmul.f32.gmra.mxu0 %v409
  %v431 = vpop.f32.mrf.mxu0
  %v432 = vadd.f32 0.0, %v431
  %433 = vdwg.mxu0
  %436 = vrot.lane.b32.xlu0 %v429, 16
  %v437 = vpop.permute.xlu0 %436
  %438 = vrot.lane.b32.xlu0 %v432, 16
  %v439 = vpop.permute.xlu0 %438
  %v442 = vsel %vm241, %v329, %v437
  %v443 = vsel %vm241, %v332, %v439
  %v444 = vpack.c.bf16 %v443, %v442
  %v445 = vperm.slane %v196, 0
  %v450 = vunpack.c.l.b16 %v179
  %v451 = vunpack.c.l.b16 %v180
  %v452 = vunpack.c.l.b16 %v181
  %v453 = vunpack.c.l.b16 %v182
  %v454 = vpack.c.b16 %v451, %v450
  %v455 = vpack.c.b16 %v453, %v452
  %v459 = vsel %vm217, %v444, 0
  %461 = vmatpush.bf16.msra.mxu0 0
  %462 = vmatpush.bf16.msra.mxu0 0
  %463 = vmatpush.bf16.msra.mxu0 0
  %464 = vmatpush.bf16.msra.mxu0 0
  %465 = vmatpush.bf16.msra.mxu0 0
  %466 = vmatpush.bf16.msra.mxu0 0
  %467 = vmatpush.bf16.msra.mxu0 %v455
  %468 = vmatpush.bf16.msra.mxu0 %v454
  %469 = vmatmul.bf16.gmra.mxu0 %v459
  %v470 = vpop.f32.mrf.mxu0
  %v471 = vadd.f32 %v445, %v470
  %v472 = vpop.f32.mrf.mxu0
  %v473 = vadd.f32 %v445, %v472
  %474 = vdwg.mxu0
  %v475 = vadd.f32 %v471, %v171
  %v476 = vadd.f32 %v473, %v173
  %v477 = vsel %vm217, %v475, 0.0
  %478 = vadd.xlane.f32.xlu0 %v477
  %v479 = vpop.xlane.xlu0 %478
  %v480 = vsel %vm217, %v476, 0.0
  %481 = vadd.xlane.f32.xlu0 %v480
  %v482 = vpop.xlane.xlu0 %481
  %v483 = vrcp.pop 32.0
  %v484 = vmul.f32 32.0, %v483
  %v485 = vsub.f32 1.0, %v484
  %v486 = vmul.f32 %v483, %v485
  %v487 = vadd.f32 %v483, %v486
  %vm488 = vweird.f32 %v483
  %v489 = vsel %vm488, %v483, %v487
  %v490 = vmul.f32 %v479, %v489
  %v491 = vmul.f32 %v482, %v489
  %v492 = vmul.f32 %v475, %v475
  %v493 = vmul.f32 %v476, %v476
  %v494 = vsel %vm217, %v492, 0.0
  %495 = vadd.xlane.f32.xlu0 %v494
  %v496 = vpop.xlane.xlu0 %495
  %v497 = vsel %vm217, %v493, 0.0
  %498 = vadd.xlane.f32.xlu0 %v497
  %v499 = vpop.xlane.xlu0 %498
  %v500 = vmul.f32 %v496, %v489
  %v501 = vmul.f32 %v499, %v489
  %v502 = vmul.f32 %v490, %v490
  %v503 = vmul.f32 %v491, %v491
  %v504 = vsub.f32 %v500, %v502
  %v505 = vsub.f32 %v501, %v503
  %v506 = vsub.f32 %v475, %v490
  %v507 = vsub.f32 %v476, %v491
  %v508 = vadd.f32 %v504, 1e-05
  %v509 = vadd.f32 %v505, 1e-05
  %v510 = vrsqrt.pop %v508
  %v511 = vmul.f32 %v510, %v508
  %v512 = vmul.f32 %v511, %v510
  %v513 = vmul.f32 0.5, %v512
  %v514 = vsub.f32 1.5, %v513
  %v515 = vmul.f32 %v510, %v514
  %vm516 = vweird.f32 %v508
  %vm517 = vweird.f32 %v510
  %vm518 = vmor %vm516, %vm517
  %v519 = vsel %vm518, %v510, %v515
  %v520 = vrsqrt.pop %v509
  %v521 = vmul.f32 %v520, %v509
  %v522 = vmul.f32 %v521, %v520
  %v523 = vmul.f32 0.5, %v522
  %v524 = vsub.f32 1.5, %v523
  %v525 = vmul.f32 %v520, %v524
  %vm526 = vweird.f32 %v509
  %vm527 = vweird.f32 %v520
  %vm528 = vmor %vm526, %vm527
  %v529 = vsel %vm528, %v520, %v525
  %v530 = vmul.f32 %v506, %v519
  %v531 = vmul.f32 %v507, %v529
  %v532 = vperm.slane %v197, 0
  %v533 = vmul.f32 %v530, %v532
  %v534 = vmul.f32 %v531, %v532
  %v535 = vperm.slane %v198, 0
  %v536 = vadd.f32 %v533, %v535
  %v537 = vadd.f32 %v534, %v535
  %v538 = vpack.c.bf16 %v537, %v536
  %v539 = vperm.slane %v199, 0
  %v544 = vunpack.c.l.b16 %v183
  %v545 = vunpack.c.l.b16 %v184
  %v546 = vunpack.c.l.b16 %v185
  %v547 = vunpack.c.l.b16 %v186
  %v548 = vpack.c.b16 %v545, %v544
  %v549 = vpack.c.b16 %v547, %v546
  %v553 = vsel %vm217, %v538, 0
  %555 = vmatpush.bf16.msra.mxu0 0
  %556 = vmatpush.bf16.msra.mxu0 0
  %557 = vmatpush.bf16.msra.mxu0 0
  %558 = vmatpush.bf16.msra.mxu0 0
  %559 = vmatpush.bf16.msra.mxu0 0
  %560 = vmatpush.bf16.msra.mxu0 0
  %561 = vmatpush.bf16.msra.mxu0 %v549
  %562 = vmatpush.bf16.msra.mxu0 %v548
  %563 = vmatmul.bf16.gmra.mxu0 %v553
  %v564 = vpop.f32.mrf.mxu0
  %v565 = vadd.f32 %v539, %v564
  %v566 = vpop.f32.mrf.mxu0
  %v567 = vadd.f32 %v539, %v566
  %568 = vdwg.mxu0
  %v569 = vmax.f32 %v565, 0.0
  %v570 = vmax.f32 %v567, 0.0
  %v571 = vpack.c.bf16 %v570, %v569
  %v572 = vperm.slane %v200, 0
  %v581 = vunpack.c.l.b16 %v187
  %v582 = vunpack.c.l.b16 %v188
  %v583 = vunpack.c.l.b16 %v189
  %v584 = vunpack.c.l.b16 %v190
  %v585 = vunpack.c.l.b16 %v191
  %v586 = vunpack.c.l.b16 %v192
  %v587 = vunpack.c.l.b16 %v193
  %v588 = vunpack.c.l.b16 %v194
  %v589 = vpack.c.b16 %v582, %v581
  %v590 = vpack.c.b16 %v584, %v583
  %v591 = vpack.c.b16 %v586, %v585
  %v592 = vpack.c.b16 %v588, %v587
  %vm597 = vcmask 523264
  %v599 = vsel %vm597, %v571, 0
  %601 = vmatpush.bf16.msra.mxu0 0
  %602 = vmatpush.bf16.msra.mxu0 0
  %603 = vmatpush.bf16.msra.mxu0 0
  %604 = vmatpush.bf16.msra.mxu0 0
  %605 = vmatpush.bf16.msra.mxu0 %v592
  %606 = vmatpush.bf16.msra.mxu0 %v591
  %607 = vmatpush.bf16.msra.mxu0 %v590
  %608 = vmatpush.bf16.msra.mxu0 %v589
  %609 = vmatmul.bf16.gmra.mxu0 %v599
  %v610 = vpop.f32.mrf.mxu0
  %v611 = vadd.f32 %v572, %v610
  %v612 = vpop.f32.mrf.mxu0
  %v613 = vadd.f32 %v572, %v612
  %614 = vdwg.mxu0
  %v615 = vadd.f32 %v611, %v536
  %v616 = vadd.f32 %v613, %v537
  %v617 = vsel %vm217, %v615, 0.0
  %618 = vadd.xlane.f32.xlu0 %v617
  %v619 = vpop.xlane.xlu0 %618
  %v620 = vsel %vm217, %v616, 0.0
  %621 = vadd.xlane.f32.xlu0 %v620
  %v622 = vpop.xlane.xlu0 %621
  %v623 = vmul.f32 %v619, %v489
  %v624 = vmul.f32 %v622, %v489
  %v625 = vmul.f32 %v615, %v615
  %v626 = vmul.f32 %v616, %v616
  %v627 = vsel %vm217, %v625, 0.0
  %628 = vadd.xlane.f32.xlu0 %v627
  %v629 = vpop.xlane.xlu0 %628
  %v630 = vsel %vm217, %v626, 0.0
  %631 = vadd.xlane.f32.xlu0 %v630
  %v632 = vpop.xlane.xlu0 %631
  %v633 = vmul.f32 %v629, %v489
  %v634 = vmul.f32 %v632, %v489
  %v635 = vmul.f32 %v623, %v623
  %v636 = vmul.f32 %v624, %v624
  %v637 = vsub.f32 %v633, %v635
  %v638 = vsub.f32 %v634, %v636
  %v639 = vsub.f32 %v615, %v623
  %v640 = vsub.f32 %v616, %v624
  %v641 = vadd.f32 %v637, 1e-05
  %v642 = vadd.f32 %v638, 1e-05
  %v643 = vrsqrt.pop %v641
  %v644 = vmul.f32 %v643, %v641
  %v645 = vmul.f32 %v644, %v643
  %v646 = vmul.f32 0.5, %v645
  %v647 = vsub.f32 1.5, %v646
  %v648 = vmul.f32 %v643, %v647
  %vm649 = vweird.f32 %v641
  %vm650 = vweird.f32 %v643
  %vm651 = vmor %vm649, %vm650
  %v652 = vsel %vm651, %v643, %v648
  %v653 = vrsqrt.pop %v642
  %v654 = vmul.f32 %v653, %v642
  %v655 = vmul.f32 %v654, %v653
  %v656 = vmul.f32 0.5, %v655
  %v657 = vsub.f32 1.5, %v656
  %v658 = vmul.f32 %v653, %v657
  %vm659 = vweird.f32 %v642
  %vm660 = vweird.f32 %v653
  %vm661 = vmor %vm659, %vm660
  %v662 = vsel %vm661, %v653, %v658
  %v663 = vmul.f32 %v639, %v652
  %v664 = vmul.f32 %v640, %v662
  %v665 = vperm.slane %v201, 0
  %v666 = vmul.f32 %v663, %v665
  %v667 = vmul.f32 %v664, %v665
  %v668 = vperm.slane %v202, 0
  %v669 = vadd.f32 %v666, %v668
  %v670 = vadd.f32 %v667, %v668
  %v671 = vld [vmem:[%s4 + $0x10] sm:$0xf]
  %v672 = vld [vmem:[%s4 + $0x14] sm:$0xf]
  %v673 = vld [vmem:[%s4 + $0x18] sm:$0xf]
  %v674 = vld [vmem:[%s4 + $0x1c] sm:$0xf]
  %v675 = vld [vmem:[%s5 + $0x10] sm:$0xf]
  %v676 = vld [vmem:[%s5 + $0x14] sm:$0xf]
  %v677 = vld [vmem:[%s5 + $0x18] sm:$0xf]
  %v678 = vld [vmem:[%s5 + $0x1c] sm:$0xf]
  %v679 = vld [vmem:[%s6 + $0x10] sm:$0xf]
  %v680 = vld [vmem:[%s6 + $0x14] sm:$0xf]
  %v681 = vld [vmem:[%s6 + $0x18] sm:$0xf]
  %v682 = vld [vmem:[%s6 + $0x1c] sm:$0xf]
  %v683 = vld [vmem:[%s7 + $0x20] sm:$0xf]
  %v684 = vld [vmem:[%s7 + $0x24] sm:$0xf]
  %v685 = vld [vmem:[%s7 + $0x28] sm:$0xf]
  %v686 = vld [vmem:[%s7 + $0x2c] sm:$0xf]
  %v687 = vld [vmem:[%s7 + $0x30] sm:$0xf]
  %v688 = vld [vmem:[%s7 + $0x34] sm:$0xf]
  %v689 = vld [vmem:[%s7 + $0x38] sm:$0xf]
  %v690 = vld [vmem:[%s7 + $0x3c] sm:$0xf]
  %v691 = vld [vmem:[%s8 + $0x8] sm:$0x1]
  %v692 = vld [vmem:[%s8 + $0x9] sm:$0x1]
  %v693 = vld [vmem:[%s8 + $0xa] sm:$0x1]
  %v694 = vld [vmem:[%s8 + $0xb] sm:$0x1]
  %v695 = vld [vmem:[%s8 + $0xc] sm:$0x1]
  %v696 = vld [vmem:[%s8 + $0xd] sm:$0x1]
  %v697 = vld [vmem:[%s8 + $0xe] sm:$0x1]
  %v698 = vld [vmem:[%s8 + $0xf] sm:$0x1]
  %v699 = vpack.c.bf16 %v670, %v669
  %v700 = vperm.slane %v691, 0
  %v705 = vunpack.c.l.b16 %v671
  %v706 = vunpack.c.l.b16 %v672
  %v707 = vunpack.c.l.b16 %v673
  %v708 = vunpack.c.l.b16 %v674
  %v709 = vpack.c.b16 %v706, %v705
  %v710 = vpack.c.b16 %v708, %v707
  %v714 = vsel %vm217, %v699, 0
  %716 = vmatpush.bf16.msra.mxu0 0
  %717 = vmatpush.bf16.msra.mxu0 0
  %718 = vmatpush.bf16.msra.mxu0 0
  %719 = vmatpush.bf16.msra.mxu0 0
  %720 = vmatpush.bf16.msra.mxu0 0
  %721 = vmatpush.bf16.msra.mxu0 0
  %722 = vmatpush.bf16.msra.mxu0 %v710
  %723 = vmatpush.bf16.msra.mxu0 %v709
  %724 = vmatmul.bf16.gmra.mxu0 %v714
  %v725 = vpop.f32.mrf.mxu0
  %v726 = vadd.f32 %v700, %v725
  %v727 = vpop.f32.mrf.mxu0
  %v728 = vadd.f32 %v700, %v727
  %729 = vdwg.mxu0
  %732 = vrot.lane.b32.xlu0 %v726, 96
  %v733 = vpop.permute.xlu0 %732
  %734 = vrot.lane.b32.xlu0 %v728, 96
  %v735 = vpop.permute.xlu0 %734
  %v736 = vsel %vm241, %v726, 0
  %v738 = vsel %vm241, %v728, 0
  %v740 = vsel %vm241, %v733, 0
  %v742 = vsel %vm241, %v735, 0
  %744 = vmatpush.xpose.msra.mxu0 0.0
  %745 = vmatpush.xpose.msra.mxu0 0.0
  %746 = vmatpush.xpose.msra.mxu0 0.0
  %747 = vmatpush.xpose.msra.mxu0 0.0
  %748 = vmatpush.xpose.msra.mxu0 0.0
  %749 = vmatpush.xpose.msra.mxu0 0.0
  %750 = vmatpush.xpose.msra.mxu0 0.0
  %751 = vmatpush.xpose.msra.mxu0 0.0
  %752 = vmatpush.xpose.msra.mxu0 0.0
  %753 = vmatpush.xpose.msra.mxu0 0.0
  %754 = vmatpush.xpose.msra.mxu0 0.0
  %755 = vmatpush.xpose.msra.mxu0 0.0
  %756 = vmatpush.xpose.msra.mxu0 0.0
  %757 = vmatpush.xpose.msra.mxu0 0.0
  %758 = vmatpush.xpose.msra.mxu0 %v742
  %759 = vmatpush.xpose.msra.mxu0 %v740
  %760 = vmatmul.f32.gmra.mxu0 %v736
  %v761 = vpop.f32.mrf.mxu0
  %v762 = vadd.f32 0.0, %v761
  %763 = vmatmul.f32.gmra.mxu0 %v738
  %v764 = vpop.f32.mrf.mxu0
  %v765 = vadd.f32 0.0, %v764
  %766 = vdwg.mxu0
  %v767 = vmul.f32 %v762, 0.25
  %v768 = vmul.f32 %v765, 0.25
  %v769 = vadd.f32 %v767, %v134
  %v770 = vadd.f32 %v768, %v135
  %v771 = vsel %vm241, %v769, -inf
  %772 = vmax.xlane.f32.xlu0 %v771
  %v773 = vpop.xlane.xlu0 %772
  %v774 = vsel %vm241, %v770, -inf
  %775 = vmax.xlane.f32.xlu0 %v774
  %v776 = vpop.xlane.xlu0 %775
  %v777 = vsub.f32 %v769, %v773
  %v778 = vsub.f32 %v770, %v776
  %v779 = vmul.f32 %v777, 1.442695
  %v780 = vpow.pop %v779
  %v781 = vmul.f32 %v778, 1.442695
  %v782 = vpow.pop %v781
  %v783 = vsel %vm241, %v780, 0.0
  %784 = vadd.xlane.f32.xlu0 %v783
  %v785 = vpop.xlane.xlu0 %784
  %v786 = vsel %vm241, %v782, 0.0
  %787 = vadd.xlane.f32.xlu0 %v786
  %v788 = vpop.xlane.xlu0 %787
  %v789 = vrcp.pop %v785
  %v790 = vrcp.pop %v788
  %v791 = vmul.f32 %v780, %v789
  %v792 = vmul.f32 %v782, %v790
  %793 = vrot.lane.b32.xlu0 %v726, 64
  %v794 = vpop.permute.xlu0 %793
  %795 = vrot.lane.b32.xlu0 %v728, 64
  %v796 = vpop.permute.xlu0 %795
  %v800 = vsel %vm241, %v791, 0
  %v803 = vsel %vm241, %v792, 0
  %805 = vmatpush.msra.mxu0 0.0
  %806 = vmatpush.msra.mxu0 0.0
  %807 = vmatpush.msra.mxu0 0.0
  %808 = vmatpush.msra.mxu0 0.0
  %809 = vmatpush.msra.mxu0 0.0
  %810 = vmatpush.msra.mxu0 0.0
  %811 = vmatpush.msra.mxu0 0.0
  %812 = vmatpush.msra.mxu0 0.0
  %813 = vmatpush.msra.mxu0 0.0
  %814 = vmatpush.msra.mxu0 0.0
  %815 = vmatpush.msra.mxu0 0.0
  %816 = vmatpush.msra.mxu0 0.0
  %817 = vmatpush.msra.mxu0 0.0
  %818 = vmatpush.msra.mxu0 0.0
  %819 = vmatpush.msra.mxu0 %v796
  %820 = vmatpush.msra.mxu0 %v794
  %821 = vmatmul.f32.gmra.mxu0 %v800
  %v822 = vpop.f32.mrf.mxu0
  %v823 = vadd.f32 0.0, %v822
  %824 = vmatmul.f32.gmra.mxu0 %v803
  %v825 = vpop.f32.mrf.mxu0
  %v826 = vadd.f32 0.0, %v825
  %827 = vdwg.mxu0
  %828 = vrot.lane.b32.xlu0 %v726, 112
  %v829 = vpop.permute.xlu0 %828
  %830 = vrot.lane.b32.xlu0 %v728, 112
  %v831 = vpop.permute.xlu0 %830
  %832 = vrot.lane.b32.xlu0 %v726, 80
  %v833 = vpop.permute.xlu0 %832
  %834 = vrot.lane.b32.xlu0 %v728, 80
  %v835 = vpop.permute.xlu0 %834
  %v836 = vsel %vm241, %v829, 0
  %v838 = vsel %vm241, %v831, 0
  %v840 = vsel %vm241, %v833, 0
  %v842 = vsel %vm241, %v835, 0
  %844 = vmatpush.xpose.msra.mxu0 0.0
  %845 = vmatpush.xpose.msra.mxu0 0.0
  %846 = vmatpush.xpose.msra.mxu0 0.0
  %847 = vmatpush.xpose.msra.mxu0 0.0
  %848 = vmatpush.xpose.msra.mxu0 0.0
  %849 = vmatpush.xpose.msra.mxu0 0.0
  %850 = vmatpush.xpose.msra.mxu0 0.0
  %851 = vmatpush.xpose.msra.mxu0 0.0
  %852 = vmatpush.xpose.msra.mxu0 0.0
  %853 = vmatpush.xpose.msra.mxu0 0.0
  %854 = vmatpush.xpose.msra.mxu0 0.0
  %855 = vmatpush.xpose.msra.mxu0 0.0
  %856 = vmatpush.xpose.msra.mxu0 0.0
  %857 = vmatpush.xpose.msra.mxu0 0.0
  %858 = vmatpush.xpose.msra.mxu0 %v842
  %859 = vmatpush.xpose.msra.mxu0 %v840
  %860 = vmatmul.f32.gmra.mxu0 %v836
  %v861 = vpop.f32.mrf.mxu0
  %v862 = vadd.f32 0.0, %v861
  %863 = vmatmul.f32.gmra.mxu0 %v838
  %v864 = vpop.f32.mrf.mxu0
  %v865 = vadd.f32 0.0, %v864
  %866 = vdwg.mxu0
  %v867 = vmul.f32 %v862, 0.25
  %v868 = vmul.f32 %v865, 0.25
  %v869 = vadd.f32 %v867, %v134
  %v870 = vadd.f32 %v868, %v135
  %v871 = vsel %vm241, %v869, -inf
  %872 = vmax.xlane.f32.xlu0 %v871
  %v873 = vpop.xlane.xlu0 %872
  %v874 = vsel %vm241, %v870, -inf
  %875 = vmax.xlane.f32.xlu0 %v874
  %v876 = vpop.xlane.xlu0 %875
  %v877 = vsub.f32 %v869, %v873
  %v878 = vsub.f32 %v870, %v876
  %v879 = vmul.f32 %v877, 1.442695
  %v880 = vpow.pop %v879
  %v881 = vmul.f32 %v878, 1.442695
  %v882 = vpow.pop %v881
  %v883 = vsel %vm241, %v880, 0.0
  %884 = vadd.xlane.f32.xlu0 %v883
  %v885 = vpop.xlane.xlu0 %884
  %v886 = vsel %vm241, %v882, 0.0
  %887 = vadd.xlane.f32.xlu0 %v886
  %v888 = vpop.xlane.xlu0 %887
  %v889 = vrcp.pop %v885
  %v890 = vrcp.pop %v888
  %v891 = vmul.f32 %v880, %v889
  %v892 = vmul.f32 %v882, %v890
  %893 = vrot.lane.b32.xlu0 %v726, 48
  %v894 = vpop.permute.xlu0 %893
  %895 = vrot.lane.b32.xlu0 %v728, 48
  %v896 = vpop.permute.xlu0 %895
  %v900 = vsel %vm241, %v891, 0
  %v903 = vsel %vm241, %v892, 0
  %905 = vmatpush.msra.mxu0 0.0
  %906 = vmatpush.msra.mxu0 0.0
  %907 = vmatpush.msra.mxu0 0.0
  %908 = vmatpush.msra.mxu0 0.0
  %909 = vmatpush.msra.mxu0 0.0
  %910 = vmatpush.msra.mxu0 0.0
  %911 = vmatpush.msra.mxu0 0.0
  %912 = vmatpush.msra.mxu0 0.0
  %913 = vmatpush.msra.mxu0 0.0
  %914 = vmatpush.msra.mxu0 0.0
  %915 = vmatpush.msra.mxu0 0.0
  %916 = vmatpush.msra.mxu0 0.0
  %917 = vmatpush.msra.mxu0 0.0
  %918 = vmatpush.msra.mxu0 0.0
  %919 = vmatpush.msra.mxu0 %v896
  %920 = vmatpush.msra.mxu0 %v894
  %921 = vmatmul.f32.gmra.mxu0 %v900
  %v922 = vpop.f32.mrf.mxu0
  %v923 = vadd.f32 0.0, %v922
  %924 = vmatmul.f32.gmra.mxu0 %v903
  %v925 = vpop.f32.mrf.mxu0
  %v926 = vadd.f32 0.0, %v925
  %927 = vdwg.mxu0
  %930 = vrot.lane.b32.xlu0 %v923, 16
  %v931 = vpop.permute.xlu0 %930
  %932 = vrot.lane.b32.xlu0 %v926, 16
  %v933 = vpop.permute.xlu0 %932
  %v936 = vsel %vm241, %v823, %v931
  %v937 = vsel %vm241, %v826, %v933
  %v938 = vpack.c.bf16 %v937, %v936
  %v939 = vperm.slane %v692, 0
  %v944 = vunpack.c.l.b16 %v675
  %v945 = vunpack.c.l.b16 %v676
  %v946 = vunpack.c.l.b16 %v677
  %v947 = vunpack.c.l.b16 %v678
  %v948 = vpack.c.b16 %v945, %v944
  %v949 = vpack.c.b16 %v947, %v946
  %v953 = vsel %vm217, %v938, 0
  %955 = vmatpush.bf16.msra.mxu0 0
  %956 = vmatpush.bf16.msra.mxu0 0
  %957 = vmatpush.bf16.msra.mxu0 0
  %958 = vmatpush.bf16.msra.mxu0 0
  %959 = vmatpush.bf16.msra.mxu0 0
  %960 = vmatpush.bf16.msra.mxu0 0
  %961 = vmatpush.bf16.msra.mxu0 %v949
  %962 = vmatpush.bf16.msra.mxu0 %v948
  %963 = vmatmul.bf16.gmra.mxu0 %v953
  %v964 = vpop.f32.mrf.mxu0
  %v965 = vadd.f32 %v939, %v964
  %v966 = vpop.f32.mrf.mxu0
  %v967 = vadd.f32 %v939, %v966
  %968 = vdwg.mxu0
  %v969 = vadd.f32 %v965, %v669
  %v970 = vadd.f32 %v967, %v670
  %v971 = vsel %vm217, %v969, 0.0
  %972 = vadd.xlane.f32.xlu0 %v971
  %v973 = vpop.xlane.xlu0 %972
  %v974 = vsel %vm217, %v970, 0.0
  %975 = vadd.xlane.f32.xlu0 %v974
  %v976 = vpop.xlane.xlu0 %975
  %v977 = vmul.f32 %v973, %v489
  %v978 = vmul.f32 %v976, %v489
  %v979 = vmul.f32 %v969, %v969
  %v980 = vmul.f32 %v970, %v970
  %v981 = vsel %vm217, %v979, 0.0
  %982 = vadd.xlane.f32.xlu0 %v981
  %v983 = vpop.xlane.xlu0 %982
  %v984 = vsel %vm217, %v980, 0.0
  %985 = vadd.xlane.f32.xlu0 %v984
  %v986 = vpop.xlane.xlu0 %985
  %v987 = vmul.f32 %v983, %v489
  %v988 = vmul.f32 %v986, %v489
  %v989 = vmul.f32 %v977, %v977
  %v990 = vmul.f32 %v978, %v978
  %v991 = vsub.f32 %v987, %v989
  %v992 = vsub.f32 %v988, %v990
  %v993 = vsub.f32 %v969, %v977
  %v994 = vsub.f32 %v970, %v978
  %v995 = vadd.f32 %v991, 1e-05
  %v996 = vadd.f32 %v992, 1e-05
  %v997 = vrsqrt.pop %v995
  %v998 = vmul.f32 %v997, %v995
  %v999 = vmul.f32 %v998, %v997
  %v1000 = vmul.f32 0.5, %v999
  %v1001 = vsub.f32 1.5, %v1000
  %v1002 = vmul.f32 %v997, %v1001
  %vm1003 = vweird.f32 %v995
  %vm1004 = vweird.f32 %v997
  %vm1005 = vmor %vm1003, %vm1004
  %v1006 = vsel %vm1005, %v997, %v1002
  %v1007 = vrsqrt.pop %v996
  %v1008 = vmul.f32 %v1007, %v996
  %v1009 = vmul.f32 %v1008, %v1007
  %v1010 = vmul.f32 0.5, %v1009
  %v1011 = vsub.f32 1.5, %v1010
  %v1012 = vmul.f32 %v1007, %v1011
  %vm1013 = vweird.f32 %v996
  %vm1014 = vweird.f32 %v1007
  %vm1015 = vmor %vm1013, %vm1014
  %v1016 = vsel %vm1015, %v1007, %v1012
  %v1017 = vmul.f32 %v993, %v1006
  %v1018 = vmul.f32 %v994, %v1016
  %v1019 = vperm.slane %v693, 0
  %v1020 = vmul.f32 %v1017, %v1019
  %v1021 = vmul.f32 %v1018, %v1019
  %v1022 = vperm.slane %v694, 0
  %v1023 = vadd.f32 %v1020, %v1022
  %v1024 = vadd.f32 %v1021, %v1022
  %v1025 = vpack.c.bf16 %v1024, %v1023
  %v1026 = vperm.slane %v695, 0
  %v1031 = vunpack.c.l.b16 %v679
  %v1032 = vunpack.c.l.b16 %v680
  %v1033 = vunpack.c.l.b16 %v681
  %v1034 = vunpack.c.l.b16 %v682
  %v1035 = vpack.c.b16 %v1032, %v1031
  %v1036 = vpack.c.b16 %v1034, %v1033
  %v1040 = vsel %vm217, %v1025, 0
  %1042 = vmatpush.bf16.msra.mxu0 0
  %1043 = vmatpush.bf16.msra.mxu0 0
  %1044 = vmatpush.bf16.msra.mxu0 0
  %1045 = vmatpush.bf16.msra.mxu0 0
  %1046 = vmatpush.bf16.msra.mxu0 0
  %1047 = vmatpush.bf16.msra.mxu0 0
  %1048 = vmatpush.bf16.msra.mxu0 %v1036
  %1049 = vmatpush.bf16.msra.mxu0 %v1035
  %1050 = vmatmul.bf16.gmra.mxu0 %v1040
  %v1051 = vpop.f32.mrf.mxu0
  %v1052 = vadd.f32 %v1026, %v1051
  %v1053 = vpop.f32.mrf.mxu0
  %v1054 = vadd.f32 %v1026, %v1053
  %1055 = vdwg.mxu0
  %v1056 = vmax.f32 %v1052, 0.0
  %v1057 = vmax.f32 %v1054, 0.0
  %v1058 = vpack.c.bf16 %v1057, %v1056
  %v1059 = vperm.slane %v696, 0
  %v1068 = vunpack.c.l.b16 %v683
  %v1069 = vunpack.c.l.b16 %v684
  %v1070 = vunpack.c.l.b16 %v685
  %v1071 = vunpack.c.l.b16 %v686
  %v1072 = vunpack.c.l.b16 %v687
  %v1073 = vunpack.c.l.b16 %v688
  %v1074 = vunpack.c.l.b16 %v689
  %v1075 = vunpack.c.l.b16 %v690
  %v1076 = vpack.c.b16 %v1069, %v1068
  %v1077 = vpack.c.b16 %v1071, %v1070
  %v1078 = vpack.c.b16 %v1073, %v1072
  %v1079 = vpack.c.b16 %v1075, %v1074
  %v1085 = vsel %vm597, %v1058, 0
  %1087 = vmatpush.bf16.msra.mxu0 0
  %1088 = vmatpush.bf16.msra.mxu0 0
  %1089 = vmatpush.bf16.msra.mxu0 0
  %1090 = vmatpush.bf16.msra.mxu0 0
  %1091 = vmatpush.bf16.msra.mxu0 %v1079
  %1092 = vmatpush.bf16.msra.mxu0 %v1078
  %1093 = vmatpush.bf16.msra.mxu0 %v1077
  %1094 = vmatpush.bf16.msra.mxu0 %v1076
  %1095 = vmatmul.bf16.gmra.mxu0 %v1085
  %v1096 = vpop.f32.mrf.mxu0
  %v1097 = vadd.f32 %v1059, %v1096
  %v1098 = vpop.f32.mrf.mxu0
  %v1099 = vadd.f32 %v1059, %v1098
  %1100 = vdwg.mxu0
  %v1101 = vadd.f32 %v1097, %v1023
  %v1102 = vadd.f32 %v1099, %v1024
  %v1103 = vsel %vm217, %v1101, 0.0
  %1104 = vadd.xlane.f32.xlu0 %v1103
  %v1105 = vpop.xlane.xlu0 %1104
  %v1106 = vsel %vm217, %v1102, 0.0
  %1107 = vadd.xlane.f32.xlu0 %v1106
  %v1108 = vpop.xlane.xlu0 %1107
  %v1109 = vmul.f32 %v1105, %v489
  %v1110 = vmul.f32 %v1108, %v489
  %v1111 = vmul.f32 %v1101, %v1101
  %v1112 = vmul.f32 %v1102, %v1102
  %v1113 = vsel %vm217, %v1111, 0.0
  %1114 = vadd.xlane.f32.xlu0 %v1113
  %v1115 = vpop.xlane.xlu0 %1114
  %v1116 = vsel %vm217, %v1112, 0.0
  %1117 = vadd.xlane.f32.xlu0 %v1116
  %v1118 = vpop.xlane.xlu0 %1117
  %v1119 = vmul.f32 %v1115, %v489
  %v1120 = vmul.f32 %v1118, %v489
  %v1121 = vmul.f32 %v1109, %v1109
  %v1122 = vmul.f32 %v1110, %v1110
  %v1123 = vsub.f32 %v1119, %v1121
  %v1124 = vsub.f32 %v1120, %v1122
  %v1125 = vsub.f32 %v1101, %v1109
  %v1126 = vsub.f32 %v1102, %v1110
  %v1127 = vadd.f32 %v1123, 1e-05
  %v1128 = vadd.f32 %v1124, 1e-05
  %v1129 = vrsqrt.pop %v1127
  %v1130 = vmul.f32 %v1129, %v1127
  %v1131 = vmul.f32 %v1130, %v1129
  %v1132 = vmul.f32 0.5, %v1131
  %v1133 = vsub.f32 1.5, %v1132
  %v1134 = vmul.f32 %v1129, %v1133
  %vm1135 = vweird.f32 %v1127
  %vm1136 = vweird.f32 %v1129
  %vm1137 = vmor %vm1135, %vm1136
  %v1138 = vsel %vm1137, %v1129, %v1134
  %v1139 = vrsqrt.pop %v1128
  %v1140 = vmul.f32 %v1139, %v1128
  %v1141 = vmul.f32 %v1140, %v1139
  %v1142 = vmul.f32 0.5, %v1141
  %v1143 = vsub.f32 1.5, %v1142
  %v1144 = vmul.f32 %v1139, %v1143
  %vm1145 = vweird.f32 %v1128
  %vm1146 = vweird.f32 %v1139
  %vm1147 = vmor %vm1145, %vm1146
  %v1148 = vsel %vm1147, %v1139, %v1144
  %v1149 = vmul.f32 %v1125, %v1138
  %v1150 = vmul.f32 %v1126, %v1148
  %v1151 = vperm.slane %v697, 0
  %v1152 = vmul.f32 %v1149, %v1151
  %v1153 = vmul.f32 %v1150, %v1151
  %v1154 = vperm.slane %v698, 0
  %v1155 = vadd.f32 %v1152, %v1154
  %v1156 = vadd.f32 %v1153, %v1154
  %v1157 = vlaneseq
  %v1158 = vshrl.u32 %v1157, 7
  %v1159 = vlaneseq
  %v1160 = vand.u32 %v1159, 127
  %v1161 = vmul.u32 %v1158, 8
  %vm1162 = vcmp.eq.s32.totalorder %v1160, %v1161
  %v1163 = vsel %vm1162, 1, 0
  %v1164 = vcvt.s32.f32 %v1163
  %v1165 = vpack.c.bf16 %v1164, %v1164
  %v1166 = vpack.c.bf16 %v1156, %v1155
  %v1168 = vsel %vm241, %v1165, 0
  %1170 = vmatpush.bf16.msra.mxu0 0
  %1171 = vmatpush.bf16.msra.mxu0 0
  %1172 = vmatpush.bf16.msra.mxu0 0
  %1173 = vmatpush.bf16.msra.mxu0 0
  %1174 = vmatpush.bf16.msra.mxu0 0
  %1175 = vmatpush.bf16.msra.mxu0 0
  %1176 = vmatpush.bf16.msra.mxu0 0
  %1177 = vmatpush.bf16.msra.mxu0 %v1166
  %1178 = vmatmul.bf16.gmra.mxu0 %v1168
  %v1179 = vpop.f32.mrf.mxu0
  %v1180 = vadd.f32 0.0, %v1179
  %v1181 = vpop.f32.mrf.mxu0
  %1182 = vdwg.mxu0
  %s1183 = smul.u32 4, 4
  %s1184 = smul.u32 %s1183, 4
  %s1185 = sshll.u32 %s1184, 4
  %1186 = dma.done [#allocation5], %s1185
  %s1187 = smul.u32 4, 64
  %s1188 = smul.u32 %s1187, 2
  %s1189 = sshll.u32 %s1188, 4
  %1190 = dma.done %s71, %s1189
  %s1191 = smul.u32 4, 32
  %s1192 = smul.u32 %s1191, 1
  %s1193 = sshll.u32 %s1192, 4
  %1194 = dma.done %s85, %s1193
  %v1195 = vld [vmem:[%s9] ss:$4 sm:$0xf]
  %s1196 = scalar_lea.vmem %s9, 1
  %v1197 = vld [vmem:[%s1196] ss:$4 sm:$0xf]
  %s1198 = scalar_lea.vmem %s9, 2
  %v1199 = vld [vmem:[%s1198] ss:$4 sm:$0xf]
  %v1200 = vpack.c.bf16 %v1180, %v1180
  %v1201 = vld [vmem:[#allocation2] sm:$0xff]
  %v1202 = vld [vmem:[#allocation2 + $0x8] sm:$0xff]
  %v1203 = vld [vmem:[#allocation2 + $0x10] sm:$0xff]
  %v1204 = vld [vmem:[#allocation2 + $0x18] sm:$0xff]
  %v1205 = vld [vmem:[#allocation2 + $0x20] sm:$0xff]
  %v1206 = vld [vmem:[#allocation2 + $0x28] sm:$0xff]
  %v1207 = vld [vmem:[#allocation2 + $0x30] sm:$0xff]
  %v1208 = vld [vmem:[#allocation2 + $0x38] sm:$0xff]
  %v1210 = vperm.slane %v1195, 0
  %v1211 = vperm.slane %v1195, 1
  %v1212 = vperm.slane %v1195, 2
  %v1213 = vperm.slane %v1195, 3
  %v1226 = vunpack.c.l.b16 %v1201
  %v1227 = vunpack.c.h.b16 %v1201
  %v1228 = vunpack.c.l.b16 %v1202
  %v1229 = vunpack.c.h.b16 %v1202
  %v1230 = vunpack.c.l.b16 %v1203
  %v1231 = vunpack.c.h.b16 %v1203
  %v1232 = vunpack.c.l.b16 %v1204
  %v1233 = vunpack.c.h.b16 %v1204
  %v1234 = vunpack.c.l.b16 %v1205
  %v1235 = vunpack.c.h.b16 %v1205
  %v1236 = vunpack.c.l.b16 %v1206
  %v1237 = vunpack.c.h.b16 %v1206
  %v1238 = vunpack.c.l.b16 %v1207
  %v1239 = vunpack.c.h.b16 %v1207
  %v1240 = vunpack.c.l.b16 %v1208
  %v1241 = vunpack.c.h.b16 %v1208
  %v1242 = vpack.c.b16 %v1230, %v1226
  %v1243 = vpack.c.b16 %v1231, %v1227
  %v1244 = vpack.c.b16 %v1232, %v1228
  %v1245 = vpack.c.b16 %v1233, %v1229
  %v1246 = vpack.c.b16 %v1238, %v1234
  %v1247 = vpack.c.b16 %v1239, %v1235
  %v1248 = vpack.c.b16 %v1240, %v1236
  %v1249 = vpack.c.b16 %v1241, %v1237
  %v1259 = vsel %vm217, %v1200, 0
  %1261 = vmatpush.bf16.msra.mxu0 0
  %1262 = vmatpush.bf16.msra.mxu0 0
  %1263 = vmatpush.bf16.msra.mxu0 0
  %1264 = vmatpush.bf16.msra.mxu0 0
  %1265 = vmatpush.bf16.msra.mxu0 0
  %1266 = vmatpush.bf16.msra.mxu0 0
  %1267 = vmatpush.bf16.msra.mxu0 %v1246
  %1268 = vmatpush.bf16.msra.mxu0 %v1242
  %1269 = vmatmul.bf16.gmra.mxu0 %v1259
  %v1270 = vpop.f32.mrf.mxu0
  %v1271 = vadd.f32 %v1210, %v1270
  %v1272 = vpop.f32.mrf.mxu0
  %1273 = vdwg.mxu0
  %1274 = vmatpush.bf16.msra.mxu0 0
  %1275 = vmatpush.bf16.msra.mxu0 0
  %1276 = vmatpush.bf16.msra.mxu0 0
  %1277 = vmatpush.bf16.msra.mxu0 0
  %1278 = vmatpush.bf16.msra.mxu0 0
  %1279 = vmatpush.bf16.msra.mxu0 0
  %1280 = vmatpush.bf16.msra.mxu0 %v1247
  %1281 = vmatpush.bf16.msra.mxu0 %v1243
  %1282 = vmatmul.bf16.gmra.mxu0 %v1259
  %v1283 = vpop.f32.mrf.mxu0
  %v1284 = vadd.f32 %v1211, %v1283
  %v1285 = vpop.f32.mrf.mxu0
  %1286 = vdwg.mxu0
  %1287 = vmatpush.bf16.msra.mxu0 0
  %1288 = vmatpush.bf16.msra.mxu0 0
  %1289 = vmatpush.bf16.msra.mxu0 0
  %1290 = vmatpush.bf16.msra.mxu0 0
  %1291 = vmatpush.bf16.msra.mxu0 0
  %1292 = vmatpush.bf16.msra.mxu0 0
  %1293 = vmatpush.bf16.msra.mxu0 %v1248
  %1294 = vmatpush.bf16.msra.mxu0 %v1244
  %1295 = vmatmul.bf16.gmra.mxu0 %v1259
  %v1296 = vpop.f32.mrf.mxu0
  %v1297 = vadd.f32 %v1212, %v1296
  %v1298 = vpop.f32.mrf.mxu0
  %1299 = vdwg.mxu0
  %1300 = vmatpush.bf16.msra.mxu0 0
  %1301 = vmatpush.bf16.msra.mxu0 0
  %1302 = vmatpush.bf16.msra.mxu0 0
  %1303 = vmatpush.bf16.msra.mxu0 0
  %1304 = vmatpush.bf16.msra.mxu0 0
  %1305 = vmatpush.bf16.msra.mxu0 0
  %1306 = vmatpush.bf16.msra.mxu0 %v1249
  %1307 = vmatpush.bf16.msra.mxu0 %v1245
  %1308 = vmatmul.bf16.gmra.mxu0 %v1259
  %v1309 = vpop.f32.mrf.mxu0
  %v1310 = vadd.f32 %v1213, %v1309
  %v1311 = vpop.f32.mrf.mxu0
  %1312 = vdwg.mxu0
  %v1313 = vmax.f32 %v1271, 0.0
  %v1314 = vmax.f32 %v1284, 0.0
  %v1315 = vmax.f32 %v1297, 0.0
  %v1316 = vmax.f32 %v1310, 0.0
  %v1317 = vpack.c.bf16 %v1313, %v1313
  %v1318 = vpack.c.bf16 %v1314, %v1314
  %v1319 = vpack.c.bf16 %v1315, %v1315
  %v1320 = vpack.c.bf16 %v1316, %v1316
  %v1321 = vld [vmem:[#allocation3] sm:$0xff]
  %v1322 = vld [vmem:[#allocation3 + $0x8] sm:$0xff]
  %v1323 = vld [vmem:[#allocation3 + $0x10] sm:$0xff]
  %v1324 = vld [vmem:[#allocation3 + $0x18] sm:$0xff]
  %v1325 = vld [vmem:[#allocation3 + $0x20] sm:$0xff]
  %v1326 = vld [vmem:[#allocation3 + $0x28] sm:$0xff]
  %v1327 = vld [vmem:[#allocation3 + $0x30] sm:$0xff]
  %v1328 = vld [vmem:[#allocation3 + $0x38] sm:$0xff]
  %v1329 = vld [vmem:[#allocation3 + $0x40] sm:$0xff]
  %v1330 = vld [vmem:[#allocation3 + $0x48] sm:$0xff]
  %v1331 = vld [vmem:[#allocation3 + $0x50] sm:$0xff]
  %v1332 = vld [vmem:[#allocation3 + $0x58] sm:$0xff]
  %v1333 = vld [vmem:[#allocation3 + $0x60] sm:$0xff]
  %v1334 = vld [vmem:[#allocation3 + $0x68] sm:$0xff]
  %v1335 = vld [vmem:[#allocation3 + $0x70] sm:$0xff]
  %v1336 = vld [vmem:[#allocation3 + $0x78] sm:$0xff]
  %v1337 = vld [vmem:[#allocation3 + $0x80] sm:$0xff]
  %v1338 = vld [vmem:[#allocation3 + $0x88] sm:$0xff]
  %v1339 = vld [vmem:[#allocation3 + $0x90] sm:$0xff]
  %v1340 = vld [vmem:[#allocation3 + $0x98] sm:$0xff]
  %v1341 = vld [vmem:[#allocation3 + $0xa0] sm:$0xff]
  %v1342 = vld [vmem:[#allocation3 + $0xa8] sm:$0xff]
  %v1343 = vld [vmem:[#allocation3 + $0xb0] sm:$0xff]
  %v1344 = vld [vmem:[#allocation3 + $0xb8] sm:$0xff]
  %v1345 = vld [vmem:[#allocation3 + $0xc0] sm:$0xff]
  %v1346 = vld [vmem:[#allocation3 + $0xc8] sm:$0xff]
  %v1347 = vld [vmem:[#allocation3 + $0xd0] sm:$0xff]
  %v1348 = vld [vmem:[#allocation3 + $0xd8] sm:$0xff]
  %v1349 = vld [vmem:[#allocation3 + $0xe0] sm:$0xff]
  %v1350 = vld [vmem:[#allocation3 + $0xe8] sm:$0xff]
  %v1351 = vld [vmem:[#allocation3 + $0xf0] sm:$0xff]
  %v1352 = vld [vmem:[#allocation3 + $0xf8] sm:$0xff]
  %v1353 = vld [vmem:[#allocation3 + $0x100] sm:$0xff]
  %v1354 = vld [vmem:[#allocation3 + $0x108] sm:$0xff]
  %v1355 = vld [vmem:[#allocation3 + $0x110] sm:$0xff]
  %v1356 = vld [vmem:[#allocation3 + $0x118] sm:$0xff]
  %v1357 = vld [vmem:[#allocation3 + $0x120] sm:$0xff]
  %v1358 = vld [vmem:[#allocation3 + $0x128] sm:$0xff]
  %v1359 = vld [vmem:[#allocation3 + $0x130] sm:$0xff]
  %v1360 = vld [vmem:[#allocation3 + $0x138] sm:$0xff]
  %v1361 = vld [vmem:[#allocation3 + $0x140] sm:$0xff]
  %v1362 = vld [vmem:[#allocation3 + $0x148] sm:$0xff]
  %v1363 = vld [vmem:[#allocation3 + $0x150] sm:$0xff]
  %v1364 = vld [vmem:[#allocation3 + $0x158] sm:$0xff]
  %v1365 = vld [vmem:[#allocation3 + $0x160] sm:$0xff]
  %v1366 = vld [vmem:[#allocation3 + $0x168] sm:$0xff]
  %v1367 = vld [vmem:[#allocation3 + $0x170] sm:$0xff]
  %v1368 = vld [vmem:[#allocation3 + $0x178] sm:$0xff]
  %v1369 = vld [vmem:[#allocation3 + $0x180] sm:$0xff]
  %v1370 = vld [vmem:[#allocation3 + $0x188] sm:$0xff]
  %v1371 = vld [vmem:[#allocation3 + $0x190] sm:$0xff]
  %v1372 = vld [vmem:[#allocation3 + $0x198] sm:$0xff]
  %v1373 = vld [vmem:[#allocation3 + $0x1a0] sm:$0xff]
  %v1374 = vld [vmem:[#allocation3 + $0x1a8] sm:$0xff]
  %v1375 = vld [vmem:[#allocation3 + $0x1b0] sm:$0xff]
  %v1376 = vld [vmem:[#allocation3 + $0x1b8] sm:$0xff]
  %v1377 = vld [vmem:[#allocation3 + $0x1c0] sm:$0xff]
  %v1378 = vld [vmem:[#allocation3 + $0x1c8] sm:$0xff]
  %v1379 = vld [vmem:[#allocation3 + $0x1d0] sm:$0xff]
  %v1380 = vld [vmem:[#allocation3 + $0x1d8] sm:$0xff]
  %v1381 = vld [vmem:[#allocation3 + $0x1e0] sm:$0xff]
  %v1382 = vld [vmem:[#allocation3 + $0x1e8] sm:$0xff]
  %v1383 = vld [vmem:[#allocation3 + $0x1f0] sm:$0xff]
  %v1384 = vld [vmem:[#allocation3 + $0x1f8] sm:$0xff]
  %v1386 = vperm.slane %v1197, 0
  %v1387 = vperm.slane %v1197, 1
  %v1454 = vunpack.c.l.b16 %v1321
  %v1455 = vunpack.c.h.b16 %v1321
  %v1456 = vunpack.c.l.b16 %v1322
  %v1457 = vunpack.c.h.b16 %v1322
  %v1458 = vunpack.c.l.b16 %v1323
  %v1459 = vunpack.c.h.b16 %v1323
  %v1460 = vunpack.c.l.b16 %v1324
  %v1461 = vunpack.c.h.b16 %v1324
  %v1462 = vunpack.c.l.b16 %v1325
  %v1463 = vunpack.c.h.b16 %v1325
  %v1464 = vunpack.c.l.b16 %v1326
  %v1465 = vunpack.c.h.b16 %v1326
  %v1466 = vunpack.c.l.b16 %v1327
  %v1467 = vunpack.c.h.b16 %v1327
  %v1468 = vunpack.c.l.b16 %v1328
  %v1469 = vunpack.c.h.b16 %v1328
  %v1470 = vunpack.c.l.b16 %v1329
  %v1471 = vunpack.c.h.b16 %v1329
  %v1472 = vunpack.c.l.b16 %v1330
  %v1473 = vunpack.c.h.b16 %v1330
  %v1474 = vunpack.c.l.b16 %v1331
  %v1475 = vunpack.c.h.b16 %v1331
  %v1476 = vunpack.c.l.b16 %v1332
  %v1477 = vunpack.c.h.b16 %v1332
  %v1478 = vunpack.c.l.b16 %v1333
  %v1479 = vunpack.c.h.b16 %v1333
  %v1480 = vunpack.c.l.b16 %v1334
  %v1481 = vunpack.c.h.b16 %v1334
  %v1482 = vunpack.c.l.b16 %v1335
  %v1483 = vunpack.c.h.b16 %v1335
  %v1484 = vunpack.c.l.b16 %v1336
  %v1485 = vunpack.c.h.b16 %v1336
  %v1486 = vunpack.c.l.b16 %v1337
  %v1487 = vunpack.c.h.b16 %v1337
  %v1488 = vunpack.c.l.b16 %v1338
  %v1489 = vunpack.c.h.b16 %v1338
  %v1490 = vunpack.c.l.b16 %v1339
  %v1491 = vunpack.c.h.b16 %v1339
  %v1492 = vunpack.c.l.b16 %v1340
  %v1493 = vunpack.c.h.b16 %v1340
  %v1494 = vunpack.c.l.b16 %v1341
  %v1495 = vunpack.c.h.b16 %v1341
  %v1496 = vunpack.c.l.b16 %v1342
  %v1497 = vunpack.c.h.b16 %v1342
  %v1498 = vunpack.c.l.b16 %v1343
  %v1499 = vunpack.c.h.b16 %v1343
  %v1500 = vunpack.c.l.b16 %v1344
  %v1501 = vunpack.c.h.b16 %v1344
  %v1502 = vunpack.c.l.b16 %v1345
  %v1503 = vunpack.c.h.b16 %v1345
  %v1504 = vunpack.c.l.b16 %v1346
  %v1505 = vunpack.c.h.b16 %v1346
  %v1506 = vunpack.c.l.b16 %v1347
  %v1507 = vunpack.c.h.b16 %v1347
  %v1508 = vunpack.c.l.b16 %v1348
  %v1509 = vunpack.c.h.b16 %v1348
  %v1510 = vunpack.c.l.b16 %v1349
  %v1511 = vunpack.c.h.b16 %v1349
  %v1512 = vunpack.c.l.b16 %v1350
  %v1513 = vunpack.c.h.b16 %v1350
  %v1514 = vunpack.c.l.b16 %v1351
  %v1515 = vunpack.c.h.b16 %v1351
  %v1516 = vunpack.c.l.b16 %v1352
  %v1517 = vunpack.c.h.b16 %v1352
  %v1518 = vunpack.c.l.b16 %v1353
  %v1519 = vunpack.c.h.b16 %v1353
  %v1520 = vunpack.c.l.b16 %v1354
  %v1521 = vunpack.c.h.b16 %v1354
  %v1522 = vunpack.c.l.b16 %v1355
  %v1523 = vunpack.c.h.b16 %v1355
  %v1524 = vunpack.c.l.b16 %v1356
  %v1525 = vunpack.c.h.b16 %v1356
  %v1526 = vunpack.c.l.b16 %v1357
  %v1527 = vunpack.c.h.b16 %v1357
  %v1528 = vunpack.c.l.b16 %v1358
  %v1529 = vunpack.c.h.b16 %v1358
  %v1530 = vunpack.c.l.b16 %v1359
  %v1531 = vunpack.c.h.b16 %v1359
  %v1532 = vunpack.c.l.b16 %v1360
  %v1533 = vunpack.c.h.b16 %v1360
  %v1534 = vunpack.c.l.b16 %v1361
  %v1535 = vunpack.c.h.b16 %v1361
  %v1536 = vunpack.c.l.b16 %v1362
  %v1537 = vunpack.c.h.b16 %v1362
  %v1538 = vunpack.c.l.b16 %v1363
  %v1539 = vunpack.c.h.b16 %v1363
  %v1540 = vunpack.c.l.b16 %v1364
  %v1541 = vunpack.c.h.b16 %v1364
  %v1542 = vunpack.c.l.b16 %v1365
  %v1543 = vunpack.c.h.b16 %v1365
  %v1544 = vunpack.c.l.b16 %v1366
  %v1545 = vunpack.c.h.b16 %v1366
  %v1546 = vunpack.c.l.b16 %v1367
  %v1547 = vunpack.c.h.b16 %v1367
  %v1548 = vunpack.c.l.b16 %v1368
  %v1549 = vunpack.c.h.b16 %v1368
  %v1550 = vunpack.c.l.b16 %v1369
  %v1551 = vunpack.c.h.b16 %v1369
  %v1552 = vunpack.c.l.b16 %v1370
  %v1553 = vunpack.c.h.b16 %v1370
  %v1554 = vunpack.c.l.b16 %v1371
  %v1555 = vunpack.c.h.b16 %v1371
  %v1556 = vunpack.c.l.b16 %v1372
  %v1557 = vunpack.c.h.b16 %v1372
  %v1558 = vunpack.c.l.b16 %v1373
  %v1559 = vunpack.c.h.b16 %v1373
  %v1560 = vunpack.c.l.b16 %v1374
  %v1561 = vunpack.c.h.b16 %v1374
  %v1562 = vunpack.c.l.b16 %v1375
  %v1563 = vunpack.c.h.b16 %v1375
  %v1564 = vunpack.c.l.b16 %v1376
  %v1565 = vunpack.c.h.b16 %v1376
  %v1566 = vunpack.c.l.b16 %v1377
  %v1567 = vunpack.c.h.b16 %v1377
  %v1568 = vunpack.c.l.b16 %v1378
  %v1569 = vunpack.c.h.b16 %v1378
  %v1570 = vunpack.c.l.b16 %v1379
  %v1571 = vunpack.c.h.b16 %v1379
  %v1572 = vunpack.c.l.b16 %v1380
  %v1573 = vunpack.c.h.b16 %v1380
  %v1574 = vunpack.c.l.b16 %v1381
  %v1575 = vunpack.c.h.b16 %v1381
  %v1576 = vunpack.c.l.b16 %v1382
  %v1577 = vunpack.c.h.b16 %v1382
  %v1578 = vunpack.c.l.b16 %v1383
  %v1579 = vunpack.c.h.b16 %v1383
  %v1580 = vunpack.c.l.b16 %v1384
  %v1581 = vunpack.c.h.b16 %v1384
  %v1582 = vpack.c.b16 %v1456, %v1454
  %v1583 = vpack.c.b16 %v1457, %v1455
  %v1584 = vpack.c.b16 %v1460, %v1458
  %v1585 = vpack.c.b16 %v1461, %v1459
  %v1586 = vpack.c.b16 %v1464, %v1462
  %v1587 = vpack.c.b16 %v1465, %v1463
  %v1588 = vpack.c.b16 %v1468, %v1466
  %v1589 = vpack.c.b16 %v1469, %v1467
  %v1590 = vpack.c.b16 %v1472, %v1470
  %v1591 = vpack.c.b16 %v1473, %v1471
  %v1592 = vpack.c.b16 %v1476, %v1474
  %v1593 = vpack.c.b16 %v1477, %v1475
  %v1594 = vpack.c.b16 %v1480, %v1478
  %v1595 = vpack.c.b16 %v1481, %v1479
  %v1596 = vpack.c.b16 %v1484, %v1482
  %v1597 = vpack.c.b16 %v1485, %v1483
  %v1598 = vpack.c.b16 %v1488, %v1486
  %v1599 = vpack.c.b16 %v1489, %v1487
  %v1600 = vpack.c.b16 %v1492, %v1490
  %v1601 = vpack.c.b16 %v1493, %v1491
  %v1602 = vpack.c.b16 %v1496, %v1494
  %v1603 = vpack.c.b16 %v1497, %v1495
  %v1604 = vpack.c.b16 %v1500, %v1498
  %v1605 = vpack.c.b16 %v1501, %v1499
  %v1606 = vpack.c.b16 %v1504, %v1502
  %v1607 = vpack.c.b16 %v1505, %v1503
  %v1608 = vpack.c.b16 %v1508, %v1506
  %v1609 = vpack.c.b16 %v1509, %v1507
  %v1610 = vpack.c.b16 %v1512, %v1510
  %v1611 = vpack.c.b16 %v1513, %v1511
  %v1612 = vpack.c.b16 %v1516, %v1514
  %v1613 = vpack.c.b16 %v1517, %v1515
  %v1614 = vpack.c.b16 %v1520, %v1518
  %v1615 = vpack.c.b16 %v1521, %v1519
  %v1616 = vpack.c.b16 %v1524, %v1522
  %v1617 = vpack.c.b16 %v1525, %v1523
  %v1618 = vpack.c.b16 %v1528, %v1526
  %v1619 = vpack.c.b16 %v1529, %v1527
  %v1620 = vpack.c.b16 %v1532, %v1530
  %v1621 = vpack.c.b16 %v1533, %v1531
  %v1622 = vpack.c.b16 %v1536, %v1534
  %v1623 = vpack.c.b16 %v1537, %v1535
  %v1624 = vpack.c.b16 %v1540, %v1538
  %v1625 = vpack.c.b16 %v1541, %v1539
  %v1626 = vpack.c.b16 %v1544, %v1542
  %v1627 = vpack.c.b16 %v1545, %v1543
  %v1628 = vpack.c.b16 %v1548, %v1546
  %v1629 = vpack.c.b16 %v1549, %v1547
  %v1630 = vpack.c.b16 %v1552, %v1550
  %v1631 = vpack.c.b16 %v1553, %v1551
  %v1632 = vpack.c.b16 %v1556, %v1554
  %v1633 = vpack.c.b16 %v1557, %v1555
  %v1634 = vpack.c.b16 %v1560, %v1558
  %v1635 = vpack.c.b16 %v1561, %v1559
  %v1636 = vpack.c.b16 %v1564, %v1562
  %v1637 = vpack.c.b16 %v1565, %v1563
  %v1638 = vpack.c.b16 %v1568, %v1566
  %v1639 = vpack.c.b16 %v1569, %v1567
  %v1640 = vpack.c.b16 %v1572, %v1570
  %v1641 = vpack.c.b16 %v1573, %v1571
  %v1642 = vpack.c.b16 %v1576, %v1574
  %v1643 = vpack.c.b16 %v1577, %v1575
  %v1644 = vpack.c.b16 %v1580, %v1578
  %v1645 = vpack.c.b16 %v1581, %v1579
  %1710 = vmatpush.bf16.msra.mxu0 %v1596
  %1711 = vmatpush.bf16.msra.mxu0 %v1594
  %1712 = vmatpush.bf16.msra.mxu0 %v1592
  %1713 = vmatpush.bf16.msra.mxu0 %v1590
  %1714 = vmatpush.bf16.msra.mxu0 %v1588
  %1715 = vmatpush.bf16.msra.mxu0 %v1586
  %1716 = vmatpush.bf16.msra.mxu0 %v1584
  %1717 = vmatpush.bf16.msra.mxu0 %v1582
  %1718 = vmatmul.bf16.gmra.mxu0 %v1317
  %v1719 = vpop.f32.mrf.mxu0
  %v1720 = vadd.f32 %v1386, %v1719
  %v1721 = vpop.f32.mrf.mxu0
  %1722 = vdwg.mxu0
  %1723 = vmatpush.bf16.msra.mxu0 %v1612
  %1724 = vmatpush.bf16.msra.mxu0 %v1610
  %1725 = vmatpush.bf16.msra.mxu0 %v1608
  %1726 = vmatpush.bf16.msra.mxu0 %v1606
  %1727 = vmatpush.bf16.msra.mxu0 %v1604
  %1728 = vmatpush.bf16.msra.mxu0 %v1602
  %1729 = vmatpush.bf16.msra.mxu0 %v1600
  %1730 = vmatpush.bf16.msra.mxu0 %v1598
  %1731 = vmatmul.bf16.gmra.mxu0 %v1318
  %v1732 = vpop.f32.mrf.mxu0
  %v1733 = vadd.f32 %v1720, %v1732
  %v1734 = vpop.f32.mrf.mxu0
  %1735 = vdwg.mxu0
  %1736 = vmatpush.bf16.msra.mxu0 %v1628
  %1737 = vmatpush.bf16.msra.mxu0 %v1626
  %1738 = vmatpush.bf16.msra.mxu0 %v1624
  %1739 = vmatpush.bf16.msra.mxu0 %v1622
  %1740 = vmatpush.bf16.msra.mxu0 %v1620
  %1741 = vmatpush.bf16.msra.mxu0 %v1618
  %1742 = vmatpush.bf16.msra.mxu0 %v1616
  %1743 = vmatpush.bf16.msra.mxu0 %v1614
  %1744 = vmatmul.bf16.gmra.mxu0 %v1319
  %v1745 = vpop.f32.mrf.mxu0
  %v1746 = vadd.f32 %v1733, %v1745
  %v1747 = vpop.f32.mrf.mxu0
  %1748 = vdwg.mxu0
  %1749 = vmatpush.bf16.msra.mxu0 %v1644
  %1750 = vmatpush.bf16.msra.mxu0 %v1642
  %1751 = vmatpush.bf16.msra.mxu0 %v1640
  %1752 = vmatpush.bf16.msra.mxu0 %v1638
  %1753 = vmatpush.bf16.msra.mxu0 %v1636
  %1754 = vmatpush.bf16.msra.mxu0 %v1634
  %1755 = vmatpush.bf16.msra.mxu0 %v1632
  %1756 = vmatpush.bf16.msra.mxu0 %v1630
  %1757 = vmatmul.bf16.gmra.mxu0 %v1320
  %v1758 = vpop.f32.mrf.mxu0
  %v1759 = vadd.f32 %v1746, %v1758
  %v1760 = vpop.f32.mrf.mxu0
  %1761 = vdwg.mxu0
  %1762 = vmatpush.bf16.msra.mxu0 %v1597
  %1763 = vmatpush.bf16.msra.mxu0 %v1595
  %1764 = vmatpush.bf16.msra.mxu0 %v1593
  %1765 = vmatpush.bf16.msra.mxu0 %v1591
  %1766 = vmatpush.bf16.msra.mxu0 %v1589
  %1767 = vmatpush.bf16.msra.mxu0 %v1587
  %1768 = vmatpush.bf16.msra.mxu0 %v1585
  %1769 = vmatpush.bf16.msra.mxu0 %v1583
  %1770 = vmatmul.bf16.gmra.mxu0 %v1317
  %v1771 = vpop.f32.mrf.mxu0
  %v1772 = vadd.f32 %v1387, %v1771
  %v1773 = vpop.f32.mrf.mxu0
  %1774 = vdwg.mxu0
  %1775 = vmatpush.bf16.msra.mxu0 %v1613
  %1776 = vmatpush.bf16.msra.mxu0 %v1611
  %1777 = vmatpush.bf16.msra.mxu0 %v1609
  %1778 = vmatpush.bf16.msra.mxu0 %v1607
  %1779 = vmatpush.bf16.msra.mxu0 %v1605
  %1780 = vmatpush.bf16.msra.mxu0 %v1603
  %1781 = vmatpush.bf16.msra.mxu0 %v1601
  %1782 = vmatpush.bf16.msra.mxu0 %v1599
  %1783 = vmatmul.bf16.gmra.mxu0 %v1318
  %v1784 = vpop.f32.mrf.mxu0
  %v1785 = vadd.f32 %v1772, %v1784
  %v1786 = vpop.f32.mrf.mxu0
  %1787 = vdwg.mxu0
  %1788 = vmatpush.bf16.msra.mxu0 %v1629
  %1789 = vmatpush.bf16.msra.mxu0 %v1627
  %1790 = vmatpush.bf16.msra.mxu0 %v1625
  %1791 = vmatpush.bf16.msra.mxu0 %v1623
  %1792 = vmatpush.bf16.msra.mxu0 %v1621
  %1793 = vmatpush.bf16.msra.mxu0 %v1619
  %1794 = vmatpush.bf16.msra.mxu0 %v1617
  %1795 = vmatpush.bf16.msra.mxu0 %v1615
  %1796 = vmatmul.bf16.gmra.mxu0 %v1319
  %v1797 = vpop.f32.mrf.mxu0
  %v1798 = vadd.f32 %v1785, %v1797
  %v1799 = vpop.f32.mrf.mxu0
  %1800 = vdwg.mxu0
  %1801 = vmatpush.bf16.msra.mxu0 %v1645
  %1802 = vmatpush.bf16.msra.mxu0 %v1643
  %1803 = vmatpush.bf16.msra.mxu0 %v1641
  %1804 = vmatpush.bf16.msra.mxu0 %v1639
  %1805 = vmatpush.bf16.msra.mxu0 %v1637
  %1806 = vmatpush.bf16.msra.mxu0 %v1635
  %1807 = vmatpush.bf16.msra.mxu0 %v1633
  %1808 = vmatpush.bf16.msra.mxu0 %v1631
  %1809 = vmatmul.bf16.gmra.mxu0 %v1320
  %v1810 = vpop.f32.mrf.mxu0
  %v1811 = vadd.f32 %v1798, %v1810
  %v1812 = vpop.f32.mrf.mxu0
  %1813 = vdwg.mxu0
  %v1814 = vmax.f32 %v1759, 0.0
  %v1815 = vmax.f32 %v1811, 0.0
  %v1816 = vpack.c.bf16 %v1814, %v1814
  %v1817 = vpack.c.bf16 %v1815, %v1815
  %v1818 = vld [vmem:[#allocation4] sm:$0xf]
  %v1819 = vld [vmem:[#allocation4 + $0x4] sm:$0xf]
  %v1820 = vld [vmem:[#allocation4 + $0x8] sm:$0xf]
  %v1821 = vld [vmem:[#allocation4 + $0xc] sm:$0xf]
  %v1822 = vld [vmem:[#allocation4 + $0x10] sm:$0xf]
  %v1823 = vld [vmem:[#allocation4 + $0x14] sm:$0xf]
  %v1824 = vld [vmem:[#allocation4 + $0x18] sm:$0xf]
  %v1825 = vld [vmem:[#allocation4 + $0x1c] sm:$0xf]
  %v1826 = vld [vmem:[#allocation4 + $0x20] sm:$0xf]
  %v1827 = vld [vmem:[#allocation4 + $0x24] sm:$0xf]
  %v1828 = vld [vmem:[#allocation4 + $0x28] sm:$0xf]
  %v1829 = vld [vmem:[#allocation4 + $0x2c] sm:$0xf]
  %v1830 = vld [vmem:[#allocation4 + $0x30] sm:$0xf]
  %v1831 = vld [vmem:[#allocation4 + $0x34] sm:$0xf]
  %v1832 = vld [vmem:[#allocation4 + $0x38] sm:$0xf]
  %v1833 = vld [vmem:[#allocation4 + $0x3c] sm:$0xf]
  %v1834 = vld [vmem:[#allocation4 + $0x40] sm:$0xf]
  %v1835 = vld [vmem:[#allocation4 + $0x44] sm:$0xf]
  %v1836 = vld [vmem:[#allocation4 + $0x48] sm:$0xf]
  %v1837 = vld [vmem:[#allocation4 + $0x4c] sm:$0xf]
  %v1838 = vld [vmem:[#allocation4 + $0x50] sm:$0xf]
  %v1839 = vld [vmem:[#allocation4 + $0x54] sm:$0xf]
  %v1840 = vld [vmem:[#allocation4 + $0x58] sm:$0xf]
  %v1841 = vld [vmem:[#allocation4 + $0x5c] sm:$0xf]
  %v1842 = vld [vmem:[#allocation4 + $0x60] sm:$0xf]
  %v1843 = vld [vmem:[#allocation4 + $0x64] sm:$0xf]
  %v1844 = vld [vmem:[#allocation4 + $0x68] sm:$0xf]
  %v1845 = vld [vmem:[#allocation4 + $0x6c] sm:$0xf]
  %v1846 = vld [vmem:[#allocation4 + $0x70] sm:$0xf]
  %v1847 = vld [vmem:[#allocation4 + $0x74] sm:$0xf]
  %v1848 = vld [vmem:[#allocation4 + $0x78] sm:$0xf]
  %v1849 = vld [vmem:[#allocation4 + $0x7c] sm:$0xf]
  %v1851 = vperm.slane %v1199, 0
  %v1885 = vunpack.c.l.b16 %v1818
  %v1886 = vunpack.c.l.b16 %v1819
  %v1887 = vunpack.c.l.b16 %v1820
  %v1888 = vunpack.c.l.b16 %v1821
  %v1889 = vunpack.c.l.b16 %v1822
  %v1890 = vunpack.c.l.b16 %v1823
  %v1891 = vunpack.c.l.b16 %v1824
  %v1892 = vunpack.c.l.b16 %v1825
  %v1893 = vunpack.c.l.b16 %v1826
  %v1894 = vunpack.c.l.b16 %v1827
  %v1895 = vunpack.c.l.b16 %v1828
  %v1896 = vunpack.c.l.b16 %v1829
  %v1897 = vunpack.c.l.b16 %v1830
  %v1898 = vunpack.c.l.b16 %v1831
  %v1899 = vunpack.c.l.b16 %v1832
  %v1900 = vunpack.c.l.b16 %v1833
  %v1901 = vunpack.c.l.b16 %v1834
  %v1902 = vunpack.c.l.b16 %v1835
  %v1903 = vunpack.c.l.b16 %v1836
  %v1904 = vunpack.c.l.b16 %v1837
  %v1905 = vunpack.c.l.b16 %v1838
  %v1906 = vunpack.c.l.b16 %v1839
  %v1907 = vunpack.c.l.b16 %v1840
  %v1908 = vunpack.c.l.b16 %v1841
  %v1909 = vunpack.c.l.b16 %v1842
  %v1910 = vunpack.c.l.b16 %v1843
  %v1911 = vunpack.c.l.b16 %v1844
  %v1912 = vunpack.c.l.b16 %v1845
  %v1913 = vunpack.c.l.b16 %v1846
  %v1914 = vunpack.c.l.b16 %v1847
  %v1915 = vunpack.c.l.b16 %v1848
  %v1916 = vunpack.c.l.b16 %v1849
  %v1917 = vpack.c.b16 %v1886, %v1885
  %v1918 = vpack.c.b16 %v1888, %v1887
  %v1919 = vpack.c.b16 %v1890, %v1889
  %v1920 = vpack.c.b16 %v1892, %v1891
  %v1921 = vpack.c.b16 %v1894, %v1893
  %v1922 = vpack.c.b16 %v1896, %v1895
  %v1923 = vpack.c.b16 %v1898, %v1897
  %v1924 = vpack.c.b16 %v1900, %v1899
  %v1925 = vpack.c.b16 %v1902, %v1901
  %v1926 = vpack.c.b16 %v1904, %v1903
  %v1927 = vpack.c.b16 %v1906, %v1905
  %v1928 = vpack.c.b16 %v1908, %v1907
  %v1929 = vpack.c.b16 %v1910, %v1909
  %v1930 = vpack.c.b16 %v1912, %v1911
  %v1931 = vpack.c.b16 %v1914, %v1913
  %v1932 = vpack.c.b16 %v1916, %v1915
  %1949 = vmatpush.bf16.msra.mxu0 %v1924
  %1950 = vmatpush.bf16.msra.mxu0 %v1923
  %1951 = vmatpush.bf16.msra.mxu0 %v1922
  %1952 = vmatpush.bf16.msra.mxu0 %v1921
  %1953 = vmatpush.bf16.msra.mxu0 %v1920
  %1954 = vmatpush.bf16.msra.mxu0 %v1919
  %1955 = vmatpush.bf16.msra.mxu0 %v1918
  %1956 = vmatpush.bf16.msra.mxu0 %v1917
  %1957 = vmatmul.bf16.gmra.mxu0 %v1816
  %v1958 = vpop.f32.mrf.mxu0
  %v1959 = vadd.f32 %v1851, %v1958
  %v1960 = vpop.f32.mrf.mxu0
  %1961 = vdwg.mxu0
  %1962 = vmatpush.bf16.msra.mxu0 %v1932
  %1963 = vmatpush.bf16.msra.mxu0 %v1931
  %1964 = vmatpush.bf16.msra.mxu0 %v1930
  %1965 = vmatpush.bf16.msra.mxu0 %v1929
  %1966 = vmatpush.bf16.msra.mxu0 %v1928
  %1967 = vmatpush.bf16.msra.mxu0 %v1927
  %1968 = vmatpush.bf16.msra.mxu0 %v1926
  %1969 = vmatpush.bf16.msra.mxu0 %v1925
  %1970 = vmatmul.bf16.gmra.mxu0 %v1817
  %v1971 = vpop.f32.mrf.mxu0
  %v1972 = vadd.f32 %v1959, %v1971
  %v1973 = vpop.f32.mrf.mxu0
  %1974 = vdwg.mxu0
  %1975 = vst [vmem:[%s13] sm:$0xff] %v1972
  // Predicated region
  $region84: #{head_normal_former_forward.1} parent=0 // pred_check
    _
  $region85: #{head_normal_former_forward.1} parent=0 // pred_check_branch
    %1977 = sbr.rel (0) target = $region87
  $region86: #{head_normal_former_forward.1} parent=0 // pred_region
    _
  $region87: #{head_normal_former_forward.1} parent=0 // pred_fallthru
    _
  // Predicated region
  $region88: #{head_normal_former_forward.1} parent=0 // pred_check
    _
  $region89: #{head_normal_former_forward.1} parent=0 // pred_check_branch
    %1979 = sbr.rel (0) target = $region91
  $region90: #{head_normal_former_forward.1} parent=0 // pred_region
    _
  $region91: #{head_normal_former_forward.1} parent=0 // pred_fallthru
    _
  %1980 = vsyncmov [#allocation5]
  %s1981 = vpop.sfrf %1980
  %p1982 = scmp.eq.s32.totalorder %s1981, 0
  %p1983 = pneg %p1982
  %1985 = shalt.err (%p1983)
  %s1986 = scalar_lea.sflag [#allocation5], 1
  %1987 = vsyncmov %s1986
  %s1988 = vpop.sfrf %1987
  %p1989 = scmp.eq.s32.totalorder %s1988, 0
  %p1990 = pneg %p1989
  %1992 = shalt.err (%p1990)
  %s1993 = scalar_lea.sflag [#allocation5], 2
  %1994 = vsyncmov %s1993
  %s1995 = vpop.sfrf %1994
  %p1996 = scmp.eq.s32.totalorder %s1995, 0
  %p1997 = pneg %p1996
  %1999 = shalt.err (%p1997)

</llo_original>
